<compile_context>
chip_gen: v6e
topology: v6e:2x2x1
jax: 0.10.0
libtpu: 0.0.40
codegen_flags: <defaults>
</compile_context>

<pallas_src>
import jax
import jax.numpy as jnp
from jax.experimental import pallas as pl
from jax.experimental.pallas import tpu as pltpu

L = 16          # sequence length
C_IN = 3
C1 = 32
C2 = 64
H1 = 50
N_CLASSES = 6
K = 3           # conv kernel size
L2 = L // 2     # length after pool1
L4 = L // 4     # length after pool2


def _round_up(n, m):
    return ((n + m - 1) // m) * m


def _make_kernel(tb):
    n2 = tb * L2    # rows after pool1 (per tile)

    def kernel(xc_ref, w1_ref, w2_ref, wf1_ref, wf2_ref, bias_ref, out_ref,
               y1_s, p1p_s, y2_s):
        b1 = bias_ref[0:1, :C1]
        b2 = bias_ref[1:2, :C2]
        bf1 = bias_ref[2:3, :H1]
        bf2 = bias_ref[3:4, :N_CLASSES]

        # ---- conv1 (k=3, pad=1): single im2col matmul (tb*L, 9) x (9, 32) ----
        y1 = jnp.dot(xc_ref[...], w1_ref[...],
                     preferred_element_type=jnp.float32) + b1
        y1_s[...] = jnp.maximum(y1, 0.0)                           # (tb*L, C1)

        # ---- pool1: average adjacent pairs on the VPU (pairs never cross a
        #      sample since L is even) ----
        p1 = 0.5 * (y1_s[pl.ds(0, n2, stride=2), :] +
                    y1_s[pl.ds(1, n2, stride=2), :])               # (tb*L2, C1)

        # Stage pooled activations with a zero row in front (and zero tail) so
        # conv2's three taps are plain offset reads.
        p1p_s[...] = jnp.zeros((n2 + 8, C1), jnp.float32)
        p1p_s[pl.ds(1, n2), :] = p1

        # ---- conv2 (k=3, pad=1): 3 shifted matmuls; iota mask zeroes taps
        #      that would read across a sample boundary inside the tile ----
        pos = jax.lax.broadcasted_iota(jnp.int32, (n2, 1), 0) % L2
        x0 = jnp.where(pos != 0, p1p_s[pl.ds(0, n2), :], 0.0)        # tap l-1
        x1 = p1p_s[pl.ds(1, n2), :]                                  # tap l
        x2 = jnp.where(pos != L2 - 1, p1p_s[pl.ds(2, n2), :], 0.0)   # tap l+1
        acc2 = jnp.dot(x0, w2_ref[0], preferred_element_type=jnp.float32)
        acc2 = acc2 + jnp.dot(x1, w2_ref[1], preferred_element_type=jnp.float32)
        acc2 = acc2 + jnp.dot(x2, w2_ref[2], preferred_element_type=jnp.float32)
        y2_s[...] = jnp.maximum(acc2 + b2, 0.0)                    # (tb*L2, C2)

        # ---- pool2 + AdaptiveAvgPool1d(1) == mean over the L2 positions ----
        g = y2_s[pl.ds(0, tb, stride=L2), :]
        for j in range(1, L2):
            g = g + y2_s[pl.ds(j, tb, stride=L2), :]
        g = g * (1.0 / L2)                                         # (tb, C2)

        # ---- fc1 + ReLU, fc2 + softmax ----
        h = jnp.maximum(
            jnp.dot(g, wf1_ref[...], preferred_element_type=jnp.float32) + bf1,
            0.0)                                                   # (tb, H1)
        logits = jnp.dot(h, wf2_ref[...],
                         preferred_element_type=jnp.float32) + bf2  # (tb, 6)
        m = jnp.max(logits, axis=-1, keepdims=True)
        e = jnp.exp(logits - m)
        out_ref[...] = e / jnp.sum(e, axis=-1, keepdims=True)

    return kernel


def activity_cnn_forward(x_ncl, params, *, tile_b=128):
    """x_ncl: (B, 3, L) in PyTorch NCL layout. Returns (B, 6) softmax probs."""
    w1, b1, w2, b2, wf1, bf1, wf2, bf2 = params
    B = x_ncl.shape[0]

    # Batch tile: multiple of 8 (sublane-aligned M tiles, also what v5e wants),
    # capped at tile_b; pad B up to a whole number of tiles.
    tb = min(tile_b, _round_up(B, 8))
    b_pad = _round_up(B, tb)
    nb = b_pad // tb

    x = jnp.transpose(x_ncl, (0, 2, 1)).astype(jnp.float32)        # (B, L, 3)
    if b_pad != B:
        x = jnp.pad(x, ((0, b_pad - B), (0, 0), (0, 0)))
    xp = jnp.pad(x, ((0, 0), (1, 1), (0, 0)))                      # (b_pad, L+2, 3)
    # im2col for conv1: column order [tap k, channel c] -> k*C_IN + c
    xc = jnp.concatenate([xp[:, k:k + L, :] for k in range(K)], axis=-1)
    xc = xc.reshape(b_pad * L, K * C_IN)                           # (b_pad*L, 9)

    w1r = w1.reshape(K * C_IN, C1)                                 # matches im2col order
    bias_pack = jnp.zeros((4, 128), jnp.float32)
    bias_pack = bias_pack.at[0, :C1].set(b1.reshape(-1))
    bias_pack = bias_pack.at[1, :C2].set(b2.reshape(-1))
    bias_pack = bias_pack.at[2, :H1].set(bf1.reshape(-1))
    bias_pack = bias_pack.at[3, :N_CLASSES].set(bf2.reshape(-1))

    out = pl.pallas_call(
        _make_kernel(tb),
        out_shape=jax.ShapeDtypeStruct((b_pad, N_CLASSES), jnp.float32),
        grid=(nb,),
        in_specs=[
            pl.BlockSpec((tb * L, K * C_IN), lambda b: (b, 0)),    # im2col input
            pl.BlockSpec((K * C_IN, C1), lambda b: (0, 0)),        # conv1 weight
            pl.BlockSpec((K, C1, C2), lambda b: (0, 0, 0)),        # conv2 weight
            pl.BlockSpec((C2, H1), lambda b: (0, 0)),              # fc1 weight
            pl.BlockSpec((H1, N_CLASSES), lambda b: (0, 0)),       # fc2 weight
            pl.BlockSpec((4, 128), lambda b: (0, 0)),              # packed biases
        ],
        out_specs=pl.BlockSpec((tb, N_CLASSES), lambda b: (b, 0)),
        scratch_shapes=[
            pltpu.VMEM((tb * L, C1), jnp.float32),        # conv1 output
            pltpu.VMEM((tb * L2 + 8, C1), jnp.float32),   # zero-padded pool1 output
            pltpu.VMEM((tb * L2, C2), jnp.float32),       # conv2 output
        ],
        compiler_params=pltpu.CompilerParams(
            dimension_semantics=("parallel",)),
    )(xc, w1r, w2, wf1, wf2, bias_pack)
    return out[:B]


def reference_forward(x_ncl, params):
    """Pure-JAX reference mirroring the PyTorch forward exactly."""
    w1, b1, w2, b2, wf1, bf1, wf2, bf2 = params
    x = jnp.transpose(x_ncl, (0, 2, 1)).astype(jnp.float32)        # (B, L, C_IN)
    xp = jnp.pad(x, ((0, 0), (1, 1), (0, 0)))
    y1 = sum(jnp.einsum('blc,co->blo', xp[:, k:k + L, :], w1[k]) for k in range(K)) + b1
    y1 = jax.nn.relu(y1)
    p1 = 0.5 * (y1[:, 0::2, :] + y1[:, 1::2, :])                   # AvgPool1d(2)
    p1p = jnp.pad(p1, ((0, 0), (1, 1), (0, 0)))
    y2 = sum(jnp.einsum('blc,co->blo', p1p[:, k:k + L2, :], w2[k]) for k in range(K)) + b2
    y2 = jax.nn.relu(y2)
    p2 = 0.5 * (y2[:, 0::2, :] + y2[:, 1::2, :])                   # AvgPool1d(2)
    g = jnp.mean(p2, axis=1)                                       # AdaptiveAvgPool1d(1)
    h = jax.nn.relu(g @ wf1 + bf1)
    logits = h @ wf2 + bf2
    return jax.nn.softmax(logits, axis=1)


if __name__ == "__main__":
    key = jax.random.PRNGKey(0)
    ks = jax.random.split(key, 10)
    # deterministic synthetic parameters (shapes match the nn.Module; conv
    # weights stored as (k, in, out), linear as (in, out))
    w1 = 0.3 * jax.random.normal(ks[0], (K, C_IN, C1), jnp.float32)
    b1 = 0.1 * jax.random.normal(ks[1], (1, C1), jnp.float32)
    w2 = 0.1 * jax.random.normal(ks[2], (K, C1, C2), jnp.float32)
    b2 = 0.1 * jax.random.normal(ks[3], (1, C2), jnp.float32)
    wf1 = 0.1 * jax.random.normal(ks[4], (C2, H1), jnp.float32)
    bf1 = 0.1 * jax.random.normal(ks[5], (1, H1), jnp.float32)
    wf2 = 0.1 * jax.random.normal(ks[6], (H1, N_CLASSES), jnp.float32)
    bf2 = 0.1 * jax.random.normal(ks[7], (1, N_CLASSES), jnp.float32)
    params = (w1, b1, w2, b2, wf1, bf1, wf2, bf2)

    # Small check: B=2 (one padded batch tile).
    x = jax.random.normal(ks[8], (2, C_IN, L), jnp.float32)        # PyTorch NCL input
    out = jax.block_until_ready(activity_cnn_forward(x, params))
    ref = jax.block_until_ready(reference_forward(x, params))
    assert out.shape == (2, N_CLASSES)
    assert jnp.allclose(jnp.sum(out, axis=1), 1.0, atol=1e-5)
    assert jnp.allclose(out, ref, atol=1e-5, rtol=1e-5), (out, ref)

    # Multi-tile check: B=20 with tile_b=8 -> 3 grid steps + batch padding.
    x2 = jax.random.normal(ks[9], (20, C_IN, L), jnp.float32)
    out2 = jax.block_until_ready(activity_cnn_forward(x2, params, tile_b=8))
    ref2 = jax.block_until_ready(reference_forward(x2, params))
    assert out2.shape == (20, N_CLASSES)
    assert jnp.allclose(out2, ref2, atol=1e-5, rtol=1e-5), (out2, ref2)

    print("KERNEL_OK")
</pallas_src>

<mosaic_0001>
module attributes {stable_mosaic.version = 11 : i64} {
  func.func @kernel(%arg0: i32, %arg1: memref<128x9xf32, #tpu.memory_space<vmem>>, %arg2: memref<9x32xf32, #tpu.memory_space<vmem>>, %arg3: memref<3x32x64xf32, #tpu.memory_space<vmem>>, %arg4: memref<64x50xf32, #tpu.memory_space<vmem>>, %arg5: memref<50x6xf32, #tpu.memory_space<vmem>>, %arg6: memref<4x128xf32, #tpu.memory_space<vmem>>, %arg7: memref<8x6xf32, #tpu.memory_space<vmem>>, %arg8: memref<128x32xf32, #tpu.memory_space<vmem>>, %arg9: memref<72x32xf32, #tpu.memory_space<vmem>>, %arg10: memref<64x64xf32, #tpu.memory_space<vmem>>) attributes {dimension_semantics = [#tpu.dimension_semantics<parallel>], iteration_bounds = array<i64: 1>, scalar_prefetch = 0 : i64, scratch_operands = 3 : i64, tpu.core_type = #tpu.core_type<tc>, window_params = [{transform_indices = @transform_0, window_bounds = array<i64: 128, 9>}, {pipeline_mode = #tpu.pipeline_mode<synchronous>, transform_indices = @transform_1, window_bounds = array<i64: 9, 32>}, {pipeline_mode = #tpu.pipeline_mode<synchronous>, transform_indices = @transform_2, window_bounds = array<i64: 3, 32, 64>}, {pipeline_mode = #tpu.pipeline_mode<synchronous>, transform_indices = @transform_3, window_bounds = array<i64: 64, 50>}, {pipeline_mode = #tpu.pipeline_mode<synchronous>, transform_indices = @transform_4, window_bounds = array<i64: 50, 6>}, {pipeline_mode = #tpu.pipeline_mode<synchronous>, transform_indices = @transform_5, window_bounds = array<i64: 4, 128>}, {transform_indices = @transform_6, window_bounds = array<i64: 8, 6>}]} {
    %c0 = arith.constant 0 : index
    %c0_0 = arith.constant 0 : index
    %0 = vector.load %arg6[%c0, %c0_0] : memref<4x128xf32, #tpu.memory_space<vmem>>, vector<1x32xf32>
    %c1 = arith.constant 1 : index
    %c0_1 = arith.constant 0 : index
    %1 = vector.load %arg6[%c1, %c0_1] : memref<4x128xf32, #tpu.memory_space<vmem>>, vector<1x64xf32>
    %c2 = arith.constant 2 : index
    %c0_2 = arith.constant 0 : index
    %2 = vector.load %arg6[%c2, %c0_2] : memref<4x128xf32, #tpu.memory_space<vmem>>, vector<1x50xf32>
    %c3 = arith.constant 3 : index
    %c0_3 = arith.constant 0 : index
    %3 = vector.load %arg6[%c3, %c0_3] : memref<4x128xf32, #tpu.memory_space<vmem>>, vector<1x6xf32>
    %c0_4 = arith.constant 0 : index
    %c0_5 = arith.constant 0 : index
    %4 = vector.load %arg1[%c0_4, %c0_5] : memref<128x9xf32, #tpu.memory_space<vmem>>, vector<128x9xf32>
    %c0_6 = arith.constant 0 : index
    %c0_7 = arith.constant 0 : index
    %5 = vector.load %arg2[%c0_6, %c0_7] : memref<9x32xf32, #tpu.memory_space<vmem>>, vector<9x32xf32>
    %cst = arith.constant dense<0.000000e+00> : vector<128x32xf32>
    %6 = tpu.matmul %4, %5, %cst {dimension_numbers = #tpu.dot_dimension_numbers<[1], [0], [0], [1], [0, 0, 1, 1], [], []>} : vector<128x9xf32>, vector<9x32xf32>, vector<128x32xf32> -> vector<128x32xf32>
    %7 = vector.broadcast %0 : vector<1x32xf32> to vector<128x32xf32>
    %8 = arith.addf %6, %7 : vector<128x32xf32>
    %cst_8 = arith.constant 0.000000e+00 : f32
    %9 = vector.broadcast %cst_8 : f32 to vector<128x32xf32>
    %10 = arith.maximumf %8, %9 : vector<128x32xf32>
    %c0_9 = arith.constant 0 : index
    %c0_10 = arith.constant 0 : index
    %11 = vector.load %arg8[%c0_9, %c0_10] : memref<128x32xf32, #tpu.memory_space<vmem>>, vector<128x32xf32>
    tpu.vector_store %arg8[%c0_9, %c0_10], %10 {strides = array<i32>} : memref<128x32xf32, #tpu.memory_space<vmem>>, vector<128x32xf32>,
    %c0_11 = arith.constant 0 : index
    %c0_12 = arith.constant 0 : index
    %12 = tpu.strided_load %arg8[%c0_11, %c0_12] {strides = array<i32: 2, 1>} : memref<128x32xf32, #tpu.memory_space<vmem>>, vector<64x32xf32>
    %c1_13 = arith.constant 1 : index
    %c0_14 = arith.constant 0 : index
    %13 = tpu.strided_load %arg8[%c1_13, %c0_14] {strides = array<i32: 2, 1>} : memref<128x32xf32, #tpu.memory_space<vmem>>, vector<64x32xf32>
    %14 = arith.addf %12, %13 : vector<64x32xf32>
    %cst_15 = arith.constant 5.000000e-01 : f32
    %15 = vector.broadcast %cst_15 : f32 to vector<64x32xf32>
    %16 = arith.mulf %15, %14 : vector<64x32xf32>
    %cst_16 = arith.constant 0.000000e+00 : f32
    %17 = vector.broadcast %cst_16 : f32 to vector<72x32xf32>
    %c0_17 = arith.constant 0 : index
    %c0_18 = arith.constant 0 : index
    %18 = vector.load %arg9[%c0_17, %c0_18] : memref<72x32xf32, #tpu.memory_space<vmem>>, vector<72x32xf32>
    tpu.vector_store %arg9[%c0_17, %c0_18], %17 {strides = array<i32>} : memref<72x32xf32, #tpu.memory_space<vmem>>, vector<72x32xf32>,
    %c1_19 = arith.constant 1 : index
    %c0_20 = arith.constant 0 : index
    %19 = vector.load %arg9[%c1_19, %c0_20] : memref<72x32xf32, #tpu.memory_space<vmem>>, vector<64x32xf32>
    tpu.vector_store %arg9[%c1_19, %c0_20], %16 {strides = array<i32>} : memref<72x32xf32, #tpu.memory_space<vmem>>, vector<64x32xf32>,
    %20 = tpu.iota {dimensions = array<i32: 0>} : vector<64x1xi32>
    %c8_i32 = arith.constant 8 : i32
    %c0_i32 = arith.constant 0 : i32
    %21 = arith.cmpi eq, %c8_i32, %c0_i32 : i32
    %c1_i32 = arith.constant 1 : i32
    %22 = arith.select %21, %c1_i32, %c8_i32 : i32
    %23 = vector.broadcast %22 : i32 to vector<64x1xi32>
    %24 = arith.remsi %20, %23 : vector<64x1xi32>
    %c0_i32_21 = arith.constant 0 : i32
    %25 = vector.broadcast %c0_i32_21 : i32 to vector<64x1xi32>
    %26 = arith.cmpi ne, %24, %25 : vector<64x1xi32>
    %c0_i32_22 = arith.constant 0 : i32
    %27 = vector.broadcast %c0_i32_22 : i32 to vector<64x1xi32>
    %28 = arith.cmpi slt, %24, %27 : vector<64x1xi32>
    %c0_i32_23 = arith.constant 0 : i32
    %29 = arith.cmpi slt, %22, %c0_i32_23 : i32
    %30 = vector.broadcast %29 : i1 to vector<64x1xi1>
    %31 = vector.broadcast %30 : vector<64x1xi1> to vector<64x1xi1>
    %32 = arith.xori %28, %31 : vector<64x1xi1>
    %33 = arith.andi %32, %26 : vector<64x1xi1>
    %34 = vector.broadcast %22 : i32 to vector<64x1xi32>
    %35 = arith.addi %24, %34 : vector<64x1xi32>
    %36 = arith.select %33, %35, %24 : vector<64x1xi1>, vector<64x1xi32>
    %c0_i32_24 = arith.constant 0 : i32
    %37 = vector.broadcast %c0_i32_24 : i32 to vector<64x1xi32>
    %38 = arith.cmpi ne, %36, %37 : vector<64x1xi32>
    %c0_25 = arith.constant 0 : index
    %c0_26 = arith.constant 0 : index
    %39 = vector.load %arg9[%c0_25, %c0_26] : memref<72x32xf32, #tpu.memory_space<vmem>>, vector<64x32xf32>
    %cst_27 = arith.constant 0.000000e+00 : f32
    %40 = vector.shape_cast %38 : vector<64x1xi1> to vector<64x1xi1>
    %41 = vector.broadcast %40 : vector<64x1xi1> to vector<64x32xi1>
    %42 = vector.broadcast %cst_27 : f32 to vector<64x32xf32>
    %43 = arith.select %41, %39, %42 : vector<64x32xi1>, vector<64x32xf32>
    %c1_28 = arith.constant 1 : index
    %c0_29 = arith.constant 0 : index
    %44 = vector.load %arg9[%c1_28, %c0_29] : memref<72x32xf32, #tpu.memory_space<vmem>>, vector<64x32xf32>
    %c7_i32 = arith.constant 7 : i32
    %45 = vector.broadcast %c7_i32 : i32 to vector<64x1xi32>
    %46 = arith.cmpi ne, %36, %45 : vector<64x1xi32>
    %c2_30 = arith.constant 2 : index
    %c0_31 = arith.constant 0 : index
    %47 = vector.load %arg9[%c2_30, %c0_31] : memref<72x32xf32, #tpu.memory_space<vmem>>, vector<64x32xf32>
    %cst_32 = arith.constant 0.000000e+00 : f32
    %48 = vector.shape_cast %46 : vector<64x1xi1> to vector<64x1xi1>
    %49 = vector.broadcast %48 : vector<64x1xi1> to vector<64x32xi1>
    %50 = vector.broadcast %cst_32 : f32 to vector<64x32xf32>
    %51 = arith.select %49, %47, %50 : vector<64x32xi1>, vector<64x32xf32>
    %c0_33 = arith.constant 0 : index
    %c0_34 = arith.constant 0 : index
    %c0_35 = arith.constant 0 : index
    %52 = vector.load %arg3[%c0_33, %c0_34, %c0_35] : memref<3x32x64xf32, #tpu.memory_space<vmem>>, vector<1x32x64xf32>
    %53 = vector.shape_cast %52 : vector<1x32x64xf32> to vector<32x64xf32>
    %cst_36 = arith.constant dense<0.000000e+00> : vector<64x64xf32>
    %54 = tpu.matmul %43, %53, %cst_36 {dimension_numbers = #tpu.dot_dimension_numbers<[1], [0], [0], [1], [0, 0, 1, 1], [], []>} : vector<64x32xf32>, vector<32x64xf32>, vector<64x64xf32> -> vector<64x64xf32>
    %c1_37 = arith.constant 1 : index
    %c0_38 = arith.constant 0 : index
    %c0_39 = arith.constant 0 : index
    %55 = vector.load %arg3[%c1_37, %c0_38, %c0_39] : memref<3x32x64xf32, #tpu.memory_space<vmem>>, vector<1x32x64xf32>
    %56 = vector.shape_cast %55 : vector<1x32x64xf32> to vector<32x64xf32>
    %cst_40 = arith.constant dense<0.000000e+00> : vector<64x64xf32>
    %57 = tpu.matmul %44, %56, %cst_40 {dimension_numbers = #tpu.dot_dimension_numbers<[1], [0], [0], [1], [0, 0, 1, 1], [], []>} : vector<64x32xf32>, vector<32x64xf32>, vector<64x64xf32> -> vector<64x64xf32>
    %58 = arith.addf %54, %57 : vector<64x64xf32>
    %c2_41 = arith.constant 2 : index
    %c0_42 = arith.constant 0 : index
    %c0_43 = arith.constant 0 : index
    %59 = vector.load %arg3[%c2_41, %c0_42, %c0_43] : memref<3x32x64xf32, #tpu.memory_space<vmem>>, vector<1x32x64xf32>
    %60 = vector.shape_cast %59 : vector<1x32x64xf32> to vector<32x64xf32>
    %cst_44 = arith.constant dense<0.000000e+00> : vector<64x64xf32>
    %61 = tpu.matmul %51, %60, %cst_44 {dimension_numbers = #tpu.dot_dimension_numbers<[1], [0], [0], [1], [0, 0, 1, 1], [], []>} : vector<64x32xf32>, vector<32x64xf32>, vector<64x64xf32> -> vector<64x64xf32>
    %62 = arith.addf %58, %61 : vector<64x64xf32>
    %63 = vector.broadcast %1 : vector<1x64xf32> to vector<64x64xf32>
    %64 = arith.addf %62, %63 : vector<64x64xf32>
    %cst_45 = arith.constant 0.000000e+00 : f32
    %65 = vector.broadcast %cst_45 : f32 to vector<64x64xf32>
    %66 = arith.maximumf %64, %65 : vector<64x64xf32>
    %c0_46 = arith.constant 0 : index
    %c0_47 = arith.constant 0 : index
    %67 = vector.load %arg10[%c0_46, %c0_47] : memref<64x64xf32, #tpu.memory_space<vmem>>, vector<64x64xf32>
    tpu.vector_store %arg10[%c0_46, %c0_47], %66 {strides = array<i32>} : memref<64x64xf32, #tpu.memory_space<vmem>>, vector<64x64xf32>,
    %c0_48 = arith.constant 0 : index
    %c0_49 = arith.constant 0 : index
    %68 = tpu.strided_load %arg10[%c0_48, %c0_49] {strides = array<i32: 8, 1>} : memref<64x64xf32, #tpu.memory_space<vmem>>, vector<8x64xf32>
    %c1_50 = arith.constant 1 : index
    %c0_51 = arith.constant 0 : index
    %69 = tpu.strided_load %arg10[%c1_50, %c0_51] {strides = array<i32: 8, 1>} : memref<64x64xf32, #tpu.memory_space<vmem>>, vector<8x64xf32>
    %70 = arith.addf %68, %69 : vector<8x64xf32>
    %c2_52 = arith.constant 2 : index
    %c0_53 = arith.constant 0 : index
    %71 = tpu.strided_load %arg10[%c2_52, %c0_53] {strides = array<i32: 8, 1>} : memref<64x64xf32, #tpu.memory_space<vmem>>, vector<8x64xf32>
    %72 = arith.addf %70, %71 : vector<8x64xf32>
    %c3_54 = arith.constant 3 : index
    %c0_55 = arith.constant 0 : index
    %73 = tpu.strided_load %arg10[%c3_54, %c0_55] {strides = array<i32: 8, 1>} : memref<64x64xf32, #tpu.memory_space<vmem>>, vector<8x64xf32>
    %74 = arith.addf %72, %73 : vector<8x64xf32>
    %c4 = arith.constant 4 : index
    %c0_56 = arith.constant 0 : index
    %75 = tpu.strided_load %arg10[%c4, %c0_56] {strides = array<i32: 8, 1>} : memref<64x64xf32, #tpu.memory_space<vmem>>, vector<8x64xf32>
    %76 = arith.addf %74, %75 : vector<8x64xf32>
    %c5 = arith.constant 5 : index
    %c0_57 = arith.constant 0 : index
    %77 = tpu.strided_load %arg10[%c5, %c0_57] {strides = array<i32: 8, 1>} : memref<64x64xf32, #tpu.memory_space<vmem>>, vector<8x64xf32>
    %78 = arith.addf %76, %77 : vector<8x64xf32>
    %c6 = arith.constant 6 : index
    %c0_58 = arith.constant 0 : index
    %79 = tpu.strided_load %arg10[%c6, %c0_58] {strides = array<i32: 8, 1>} : memref<64x64xf32, #tpu.memory_space<vmem>>, vector<8x64xf32>
    %80 = arith.addf %78, %79 : vector<8x64xf32>
    %c7 = arith.constant 7 : index
    %c0_59 = arith.constant 0 : index
    %81 = tpu.strided_load %arg10[%c7, %c0_59] {strides = array<i32: 8, 1>} : memref<64x64xf32, #tpu.memory_space<vmem>>, vector<8x64xf32>
    %82 = arith.addf %80, %81 : vector<8x64xf32>
    %cst_60 = arith.constant 1.250000e-01 : f32
    %83 = vector.broadcast %cst_60 : f32 to vector<8x64xf32>
    %84 = arith.mulf %82, %83 : vector<8x64xf32>
    %c0_61 = arith.constant 0 : index
    %c0_62 = arith.constant 0 : index
    %85 = vector.load %arg4[%c0_61, %c0_62] : memref<64x50xf32, #tpu.memory_space<vmem>>, vector<64x50xf32>
    %cst_63 = arith.constant dense<0.000000e+00> : vector<8x50xf32>
    %86 = tpu.matmul %84, %85, %cst_63 {dimension_numbers = #tpu.dot_dimension_numbers<[1], [0], [0], [1], [0, 0, 1, 1], [], []>} : vector<8x64xf32>, vector<64x50xf32>, vector<8x50xf32> -> vector<8x50xf32>
    %87 = vector.broadcast %2 : vector<1x50xf32> to vector<8x50xf32>
    %88 = arith.addf %86, %87 : vector<8x50xf32>
    %cst_64 = arith.constant 0.000000e+00 : f32
    %89 = vector.broadcast %cst_64 : f32 to vector<8x50xf32>
    %90 = arith.maximumf %88, %89 : vector<8x50xf32>
    %c0_65 = arith.constant 0 : index
    %c0_66 = arith.constant 0 : index
    %91 = vector.load %arg5[%c0_65, %c0_66] : memref<50x6xf32, #tpu.memory_space<vmem>>, vector<50x6xf32>
    %cst_67 = arith.constant dense<0.000000e+00> : vector<8x6xf32>
    %92 = tpu.matmul %90, %91, %cst_67 {dimension_numbers = #tpu.dot_dimension_numbers<[1], [0], [0], [1], [0, 0, 1, 1], [], []>} : vector<8x50xf32>, vector<50x6xf32>, vector<8x6xf32> -> vector<8x6xf32>
    %93 = vector.broadcast %3 : vector<1x6xf32> to vector<8x6xf32>
    %94 = arith.addf %92, %93 : vector<8x6xf32>
    %cst_68 = arith.constant dense<0xFF800000> : vector<8xf32>
    %95 = vector.multi_reduction <maximumf>, %94, %cst_68 [1] : vector<8x6xf32> to vector<8xf32>
    %96 = vector.shape_cast %95 : vector<8xf32> to vector<8x1xf32>
    %97 = vector.broadcast %96 : vector<8x1xf32> to vector<8x6xf32>
    %98 = arith.subf %94, %97 : vector<8x6xf32>
    %99 = math.exp %98 : vector<8x6xf32>
    %cst_69 = arith.constant dense<0.000000e+00> : vector<8xf32>
    %100 = vector.multi_reduction <add>, %99, %cst_69 [1] : vector<8x6xf32> to vector<8xf32>
    %101 = vector.shape_cast %100 : vector<8xf32> to vector<8x1xf32>
    %102 = vector.broadcast %101 : vector<8x1xf32> to vector<8x6xf32>
    %103 = arith.divf %99, %102 : vector<8x6xf32>
    %c0_70 = arith.constant 0 : index
    %c0_71 = arith.constant 0 : index
    %104 = vector.load %arg7[%c0_70, %c0_71] : memref<8x6xf32, #tpu.memory_space<vmem>>, vector<8x6xf32>
    tpu.vector_store %arg7[%c0_70, %c0_71], %103 {strides = array<i32>} : memref<8x6xf32, #tpu.memory_space<vmem>>, vector<8x6xf32>,
    return
  }
  func.func @transform_0(%arg0: i32) -> (i32, i32) {
    %c0_i32 = arith.constant 0 : i32
    %c0_i32_0 = arith.constant 0 : i32
    return %arg0, %c0_i32 : i32, i32
  }
  func.func @transform_1(%arg0: i32) -> (i32, i32) {
    %c0_i32 = arith.constant 0 : i32
    %c0_i32_0 = arith.constant 0 : i32
    %c0_i32_1 = arith.constant 0 : i32
    return %c0_i32, %c0_i32_0 : i32, i32
  }
  func.func @transform_2(%arg0: i32) -> (i32, i32, i32) {
    %c0_i32 = arith.constant 0 : i32
    %c0_i32_0 = arith.constant 0 : i32
    %c0_i32_1 = arith.constant 0 : i32
    %c0_i32_2 = arith.constant 0 : i32
    return %c0_i32, %c0_i32_0, %c0_i32_1 : i32, i32, i32
  }
  func.func @transform_3(%arg0: i32) -> (i32, i32) {
    %c0_i32 = arith.constant 0 : i32
    %c0_i32_0 = arith.constant 0 : i32
    %c0_i32_1 = arith.constant 0 : i32
    return %c0_i32, %c0_i32_0 : i32, i32
  }
  func.func @transform_4(%arg0: i32) -> (i32, i32) {
    %c0_i32 = arith.constant 0 : i32
    %c0_i32_0 = arith.constant 0 : i32
    %c0_i32_1 = arith.constant 0 : i32
    return %c0_i32, %c0_i32_0 : i32, i32
  }
  func.func @transform_5(%arg0: i32) -> (i32, i32) {
    %c0_i32 = arith.constant 0 : i32
    %c0_i32_0 = arith.constant 0 : i32
    %c0_i32_1 = arith.constant 0 : i32
    return %c0_i32, %c0_i32_0 : i32, i32
  }
  func.func @transform_6(%arg0: i32) -> (i32, i32) {
    %c0_i32 = arith.constant 0 : i32
    %c0_i32_0 = arith.constant 0 : i32
    return %arg0, %c0_i32 : i32, i32
  }
}

</mosaic_0001>

<llo_original>
// kernel: tpu_custom_call.1
$region0: #{tpu_custom_call.1}
  #allocation0 [shape = 'u32[]', space=smem, size = 0x4, offset = 0x4, fixed_abs, tag = 'smem constant byte address 0x4 - core index']
  #allocation1 [shape = 'u32[144,128]{1,0:T(1,128)}', space=vmem, size = 0x12000, scoped, tag = 'internal scratch']
  #allocation2 [shape = 'f32[128,32]{1,0:T(8,128)}', space=vmem, size = 0x10000, scoped, tag = 'scratch operand']
  #allocation3 [shape = 'f32[72,32]{1,0:T(8,128)}', space=vmem, size = 0x9000, scoped, tag = 'scratch operand']
  #allocation4 [shape = 'f32[64,64]{1,0:T(8,128)}', space=vmem, size = 0x8000, scoped, tag = 'scratch operand']
  %s0 = inlined_call_operand.vmem [shape: f32[128,9], index: 0, kind: input, shape index: {}]
  %s1 = inlined_call_operand.vmem [shape: f32[9,32], index: 1, kind: input, shape index: {}]
  %s2 = inlined_call_operand.vmem [shape: f32[3,32,64], index: 2, kind: input, shape index: {}]
  %s3 = inlined_call_operand.vmem [shape: f32[64,50], index: 3, kind: input, shape index: {}]
  %s4 = inlined_call_operand.vmem [shape: f32[50,6], index: 4, kind: input, shape index: {}]
  %s5 = inlined_call_operand.vmem [shape: f32[4,128], index: 5, kind: input, shape index: {}]
  %s6 = inlined_call_operand.hbm [shape: f32[8,6], index: 6, kind: output, shape index: {}]
  %s7 = sld [smem:[#allocation0]]
  $region34: #{tpu_custom_call.1} parent=0
    _
  %s9 = ssub.s32 1, %s7
  %s10 = scalar_select 0, %s9, %s7
  $region1: #{tpu_custom_call.1} parent=0
    #allocation5 [shape = 'u8[4096]{0}', space=vmem, size = 0x1000, scoped, tag = 'output window, operand 0, single buffered']
    #allocation6 [shape = 's32[1]{0}', space=sflag, size = 0x4, scoped, tag = 'scoped memory for tpu_custom_call.1']
    %11 = vsyncpa [#allocation6], 0
    // Predicated region
    $region2: #{tpu_custom_call.1} parent=1 // pred_check
      _
    $region3: #{tpu_custom_call.1} parent=1 // pred_check_branch
      %13 = sbr.rel (0) target = $region5
    $region4: #{tpu_custom_call.1} parent=1 // pred_region
      _
    $region5: #{tpu_custom_call.1} parent=1 // pred_fallthru
      _
    // Predicated region
    $region6: #{tpu_custom_call.1} parent=1 // pred_check
      _
    $region7: #{tpu_custom_call.1} parent=1 // pred_check_branch
      %15 = sbr.rel (0) target = $region9
    $region8: #{tpu_custom_call.1} parent=1 // pred_region
      _
    $region9: #{tpu_custom_call.1} parent=1 // pred_fallthru
      _
    // Predicated region
    $region10: #{tpu_custom_call.1} parent=1 // pred_check
      _
    $region11: #{tpu_custom_call.1} parent=1 // pred_check_branch
      %17 = sbr.rel (0) target = $region13
    $region12: #{tpu_custom_call.1} parent=1 // pred_region
      _
    $region13: #{tpu_custom_call.1} parent=1 // pred_fallthru
      _
    // Predicated region
    $region14: #{tpu_custom_call.1} parent=1 // pred_check
      _
    $region15: #{tpu_custom_call.1} parent=1 // pred_check_branch
      %19 = sbr.rel (0) target = $region17
    $region16: #{tpu_custom_call.1} parent=1 // pred_region
      _
    $region17: #{tpu_custom_call.1} parent=1 // pred_fallthru
      _
    // Predicated region
    $region18: #{tpu_custom_call.1} parent=1 // pred_check
      _
    $region19: #{tpu_custom_call.1} parent=1 // pred_check_branch
      %21 = sbr.rel (0) target = $region21
    $region20: #{tpu_custom_call.1} parent=1 // pred_region
      _
    $region21: #{tpu_custom_call.1} parent=1 // pred_fallthru
      _
    // Predicated region
    $region22: #{tpu_custom_call.1} parent=1 // pred_check
      _
    $region23: #{tpu_custom_call.1} parent=1 // pred_check_branch
      %23 = sbr.rel (0) target = $region25
    $region24: #{tpu_custom_call.1} parent=1 // pred_region
      _
    $region25: #{tpu_custom_call.1} parent=1 // pred_fallthru
      _
    %v24 = vld [vmem:[%s5] sm:$0x1]
    %v25 = vld [vmem:[%s5 + $0x1] sm:$0x1]
    %v26 = vld [vmem:[%s5 + $0x2] sm:$0x1]
    %v27 = vld [vmem:[%s5 + $0x3] sm:$0x1]
    %v28 = vld [vmem:[%s0] sm:$0xff]
    %v29 = vld [vmem:[%s0 + $0x8] sm:$0xff]
    %v30 = vld [vmem:[%s0 + $0x10] sm:$0xff]
    %v31 = vld [vmem:[%s0 + $0x18] sm:$0xff]
    %v32 = vld [vmem:[%s0 + $0x20] sm:$0xff]
    %v33 = vld [vmem:[%s0 + $0x28] sm:$0xff]
    %v34 = vld [vmem:[%s0 + $0x30] sm:$0xff]
    %v35 = vld [vmem:[%s0 + $0x38] sm:$0xff]
    %v36 = vld [vmem:[%s0 + $0x40] sm:$0xff]
    %v37 = vld [vmem:[%s0 + $0x48] sm:$0xff]
    %v38 = vld [vmem:[%s0 + $0x50] sm:$0xff]
    %v39 = vld [vmem:[%s0 + $0x58] sm:$0xff]
    %v40 = vld [vmem:[%s0 + $0x60] sm:$0xff]
    %v41 = vld [vmem:[%s0 + $0x68] sm:$0xff]
    %v42 = vld [vmem:[%s0 + $0x70] sm:$0xff]
    %v43 = vld [vmem:[%s0 + $0x78] sm:$0xff]
    %v44 = vld [vmem:[%s1] sm:$0xff]
    %v45 = vld [vmem:[%s1 + $0x8] sm:$0x1]
    %v46 = vlaneseq
    %v47 = vshrl.u32 %v46, 7
    %v48 = vsub.s32 0, %v47
    %v49 = vrot.slane %v24, %v48
    %vm50 = vcmask 72704
    %v52 = vsel %vm50, %v28, 0
    %v55 = vsel %vm50, %v29, 0
    %v58 = vsel %vm50, %v30, 0
    %v61 = vsel %vm50, %v31, 0
    %v64 = vsel %vm50, %v32, 0
    %v67 = vsel %vm50, %v33, 0
    %v70 = vsel %vm50, %v34, 0
    %v73 = vsel %vm50, %v35, 0
    %v76 = vsel %vm50, %v36, 0
    %v79 = vsel %vm50, %v37, 0
    %v82 = vsel %vm50, %v38, 0
    %v85 = vsel %vm50, %v39, 0
    %v88 = vsel %vm50, %v40, 0
    %v91 = vsel %vm50, %v41, 0
    %v94 = vsel %vm50, %v42, 0
    %v97 = vsel %vm50, %v43, 0
    %vm99 = vcmask 1040384
    %v101 = vsel %vm99, %v45, 0
    %103 = vmatprep.subr.mxu0 0.0
    %104 = vmatpush1.msra.mxu0 0.0
    %105 = vmatprep.subr.mxu0 0.0
    %106 = vmatpush1.msra.mxu0 0.0
    %107 = vmatprep.subr.mxu0 0.0
    %108 = vmatpush1.msra.mxu0 0.0
    %109 = vmatprep.subr.mxu0 0.0
    %110 = vmatpush1.msra.mxu0 0.0
    %111 = vmatprep.subr.mxu0 0.0
    %112 = vmatpush1.msra.mxu0 0.0
    %113 = vmatprep.subr.mxu0 0.0
    %114 = vmatpush1.msra.mxu0 0.0
    %115 = vmatprep.subr.mxu0 0.0
    %116 = vmatpush1.msra.mxu0 0.0
    %117 = vmatprep.subr.mxu0 0.0
    %118 = vmatpush1.msra.mxu0 0.0
    %119 = vmatprep.subr.mxu0 0.0
    %120 = vmatpush1.msra.mxu0 0.0
    %121 = vmatprep.subr.mxu0 0.0
    %122 = vmatpush1.msra.mxu0 0.0
    %123 = vmatprep.subr.mxu0 0.0
    %124 = vmatpush1.msra.mxu0 0.0
    %125 = vmatprep.subr.mxu0 0.0
    %126 = vmatpush1.msra.mxu0 0.0
    %127 = vmatprep.subr.mxu0 0.0
    %128 = vmatpush1.msra.mxu0 0.0
    %129 = vmatprep.subr.mxu0 0.0
    %130 = vmatpush1.msra.mxu0 0.0
    %131 = vmatprep.subr.mxu0 0.0
    %132 = vmatpush1.msra.mxu0 %v101
    %133 = vmatprep.subr.mxu0 0.0
    %134 = vmatpush1.msra.mxu0 %v44
    %135 = vmatprep.subr.mxu0 0.0
    %136 = vmatpush2.msra.mxu0 0.0
    %137 = vmatprep.subr.mxu0 0.0
    %138 = vmatpush2.msra.mxu0 0.0
    %139 = vmatprep.subr.mxu0 0.0
    %140 = vmatpush2.msra.mxu0 0.0
    %141 = vmatprep.subr.mxu0 0.0
    %142 = vmatpush2.msra.mxu0 0.0
    %143 = vmatprep.subr.mxu0 0.0
    %144 = vmatpush2.msra.mxu0 0.0
    %145 = vmatprep.subr.mxu0 0.0
    %146 = vmatpush2.msra.mxu0 0.0
    %147 = vmatprep.subr.mxu0 0.0
    %148 = vmatpush2.msra.mxu0 0.0
    %149 = vmatprep.subr.mxu0 0.0
    %150 = vmatpush2.msra.mxu0 0.0
    %151 = vmatprep.subr.mxu0 0.0
    %152 = vmatpush2.msra.mxu0 0.0
    %153 = vmatprep.subr.mxu0 0.0
    %154 = vmatpush2.msra.mxu0 0.0
    %155 = vmatprep.subr.mxu0 0.0
    %156 = vmatpush2.msra.mxu0 0.0
    %157 = vmatprep.subr.mxu0 0.0
    %158 = vmatpush2.msra.mxu0 0.0
    %159 = vmatprep.subr.mxu0 0.0
    %160 = vmatpush2.msra.mxu0 0.0
    %161 = vmatprep.subr.mxu0 0.0
    %162 = vmatpush2.msra.mxu0 0.0
    %163 = vmatprep.subr.mxu0 0.0
    %164 = vmatpush2.msra.mxu0 0.0
    %165 = vmatprep.subr.mxu0 0.0
    %166 = vmatpush2.msra.mxu0 0.0
    %167 = vmatprep.mubr.f32.mxu0 0.0
    %168 = vmatmul.mubr.f32.gmra.mxu0 %v52
    %v169 = vpop.f32.mrf.mxu0
    %v170 = vadd.f32 %v49, %v169
    %v171 = vpop.f32.mrf.mxu0
    %172 = vmatprep.mubr.f32.mxu0 0.0
    %173 = vmatmul.mubr.f32.gmra.mxu0 %v55
    %v174 = vpop.f32.mrf.mxu0
    %v175 = vadd.f32 %v49, %v174
    %v176 = vpop.f32.mrf.mxu0
    %177 = vmatprep.mubr.f32.mxu0 0.0
    %178 = vmatmul.mubr.f32.gmra.mxu0 %v58
    %v179 = vpop.f32.mrf.mxu0
    %v180 = vadd.f32 %v49, %v179
    %v181 = vpop.f32.mrf.mxu0
    %182 = vmatprep.mubr.f32.mxu0 0.0
    %183 = vmatmul.mubr.f32.gmra.mxu0 %v61
    %v184 = vpop.f32.mrf.mxu0
    %v185 = vadd.f32 %v49, %v184
    %v186 = vpop.f32.mrf.mxu0
    %187 = vmatprep.mubr.f32.mxu0 0.0
    %188 = vmatmul.mubr.f32.gmra.mxu0 %v64
    %v189 = vpop.f32.mrf.mxu0
    %v190 = vadd.f32 %v49, %v189
    %v191 = vpop.f32.mrf.mxu0
    %192 = vmatprep.mubr.f32.mxu0 0.0
    %193 = vmatmul.mubr.f32.gmra.mxu0 %v67
    %v194 = vpop.f32.mrf.mxu0
    %v195 = vadd.f32 %v49, %v194
    %v196 = vpop.f32.mrf.mxu0
    %197 = vmatprep.mubr.f32.mxu0 0.0
    %198 = vmatmul.mubr.f32.gmra.mxu0 %v70
    %v199 = vpop.f32.mrf.mxu0
    %v200 = vadd.f32 %v49, %v199
    %v201 = vpop.f32.mrf.mxu0
    %202 = vmatprep.mubr.f32.mxu0 0.0
    %203 = vmatmul.mubr.f32.gmra.mxu0 %v73
    %v204 = vpop.f32.mrf.mxu0
    %v205 = vadd.f32 %v49, %v204
    %v206 = vpop.f32.mrf.mxu0
    %207 = vmatprep.mubr.f32.mxu0 0.0
    %208 = vmatmul.mubr.f32.gmra.mxu0 %v76
    %v209 = vpop.f32.mrf.mxu0
    %v210 = vadd.f32 %v49, %v209
    %v211 = vpop.f32.mrf.mxu0
    %212 = vmatprep.mubr.f32.mxu0 0.0
    %213 = vmatmul.mubr.f32.gmra.mxu0 %v79
    %v214 = vpop.f32.mrf.mxu0
    %v215 = vadd.f32 %v49, %v214
    %v216 = vpop.f32.mrf.mxu0
    %217 = vmatprep.mubr.f32.mxu0 0.0
    %218 = vmatmul.mubr.f32.gmra.mxu0 %v82
    %v219 = vpop.f32.mrf.mxu0
    %v220 = vadd.f32 %v49, %v219
    %v221 = vpop.f32.mrf.mxu0
    %222 = vmatprep.mubr.f32.mxu0 0.0
    %223 = vmatmul.mubr.f32.gmra.mxu0 %v85
    %v224 = vpop.f32.mrf.mxu0
    %v225 = vadd.f32 %v49, %v224
    %v226 = vpop.f32.mrf.mxu0
    %227 = vmatprep.mubr.f32.mxu0 0.0
    %228 = vmatmul.mubr.f32.gmra.mxu0 %v88
    %v229 = vpop.f32.mrf.mxu0
    %v230 = vadd.f32 %v49, %v229
    %v231 = vpop.f32.mrf.mxu0
    %232 = vmatprep.mubr.f32.mxu0 0.0
    %233 = vmatmul.mubr.f32.gmra.mxu0 %v91
    %v234 = vpop.f32.mrf.mxu0
    %v235 = vadd.f32 %v49, %v234
    %v236 = vpop.f32.mrf.mxu0
    %237 = vmatprep.mubr.f32.mxu0 0.0
    %238 = vmatmul.mubr.f32.gmra.mxu0 %v94
    %v239 = vpop.f32.mrf.mxu0
    %v240 = vadd.f32 %v49, %v239
    %v241 = vpop.f32.mrf.mxu0
    %242 = vmatprep.mubr.f32.mxu0 0.0
    %243 = vmatmul.mubr.f32.gmra.mxu0 %v97
    %v244 = vpop.f32.mrf.mxu0
    %v245 = vadd.f32 %v49, %v244
    %v246 = vpop.f32.mrf.mxu0
    %247 = vdwg.mxu0
    %v248 = vmax.f32 %v170, 0.0
    %v249 = vmax.f32 %v175, 0.0
    %v250 = vmax.f32 %v180, 0.0
    %v251 = vmax.f32 %v185, 0.0
    %v252 = vmax.f32 %v190, 0.0
    %v253 = vmax.f32 %v195, 0.0
    %v254 = vmax.f32 %v200, 0.0
    %v255 = vmax.f32 %v205, 0.0
    %v256 = vmax.f32 %v210, 0.0
    %v257 = vmax.f32 %v215, 0.0
    %v258 = vmax.f32 %v220, 0.0
    %v259 = vmax.f32 %v225, 0.0
    %v260 = vmax.f32 %v230, 0.0
    %v261 = vmax.f32 %v235, 0.0
    %v262 = vmax.f32 %v240, 0.0
    %v263 = vmax.f32 %v245, 0.0
    %vm264 = vcmask 261120
    %265 = vst.msk [vmem:[#allocation2] sm:$0xff] %vm264, %v248
    %266 = vst.msk [vmem:[#allocation2 + $0x8] sm:$0xff] %vm264, %v249
    %267 = vst.msk [vmem:[#allocation2 + $0x10] sm:$0xff] %vm264, %v250
    %268 = vst.msk [vmem:[#allocation2 + $0x18] sm:$0xff] %vm264, %v251
    %269 = vst.msk [vmem:[#allocation2 + $0x20] sm:$0xff] %vm264, %v252
    %270 = vst.msk [vmem:[#allocation2 + $0x28] sm:$0xff] %vm264, %v253
    %271 = vst.msk [vmem:[#allocation2 + $0x30] sm:$0xff] %vm264, %v254
    %272 = vst.msk [vmem:[#allocation2 + $0x38] sm:$0xff] %vm264, %v255
    %273 = vst.msk [vmem:[#allocation2 + $0x40] sm:$0xff] %vm264, %v256
    %274 = vst.msk [vmem:[#allocation2 + $0x48] sm:$0xff] %vm264, %v257
    %275 = vst.msk [vmem:[#allocation2 + $0x50] sm:$0xff] %vm264, %v258
    %276 = vst.msk [vmem:[#allocation2 + $0x58] sm:$0xff] %vm264, %v259
    %277 = vst.msk [vmem:[#allocation2 + $0x60] sm:$0xff] %vm264, %v260
    %278 = vst.msk [vmem:[#allocation2 + $0x68] sm:$0xff] %vm264, %v261
    %279 = vst.msk [vmem:[#allocation2 + $0x70] sm:$0xff] %vm264, %v262
    %280 = vst.msk [vmem:[#allocation2 + $0x78] sm:$0xff] %vm264, %v263
    %v281 = vld [vmem:[#allocation2] ss:$2 sm:$0xff]
    %s282 = scalar_lea.vmem [#allocation2], 16
    %v283 = vld [vmem:[%s282] ss:$2 sm:$0xff]
    %s284 = scalar_lea.vmem [#allocation2], 32
    %v285 = vld [vmem:[%s284] ss:$2 sm:$0xff]
    %s286 = scalar_lea.vmem [#allocation2], 48
    %v287 = vld [vmem:[%s286] ss:$2 sm:$0xff]
    %s288 = scalar_lea.vmem [#allocation2], 64
    %v289 = vld [vmem:[%s288] ss:$2 sm:$0xff]
    %s290 = scalar_lea.vmem [#allocation2], 80
    %v291 = vld [vmem:[%s290] ss:$2 sm:$0xff]
    %s292 = scalar_lea.vmem [#allocation2], 96
    %v293 = vld [vmem:[%s292] ss:$2 sm:$0xff]
    %s294 = scalar_lea.vmem [#allocation2], 112
    %v295 = vld [vmem:[%s294] ss:$2 sm:$0xff]
    %s296 = scalar_lea.vmem [#allocation2], 1
    %v297 = vld [vmem:[%s296] ss:$2 sm:$0xff]
    %s298 = scalar_lea.vmem [#allocation2], 17
    %v299 = vld [vmem:[%s298] ss:$2 sm:$0xff]
    %s300 = scalar_lea.vmem [#allocation2], 33
    %v301 = vld [vmem:[%s300] ss:$2 sm:$0xff]
    %s302 = scalar_lea.vmem [#allocation2], 49
    %v303 = vld [vmem:[%s302] ss:$2 sm:$0xff]
    %s304 = scalar_lea.vmem [#allocation2], 65
    %v305 = vld [vmem:[%s304] ss:$2 sm:$0xff]
    %s306 = scalar_lea.vmem [#allocation2], 81
    %v307 = vld [vmem:[%s306] ss:$2 sm:$0xff]
    %s308 = scalar_lea.vmem [#allocation2], 97
    %v309 = vld [vmem:[%s308] ss:$2 sm:$0xff]
    %s310 = scalar_lea.vmem [#allocation2], 113
    %v311 = vld [vmem:[%s310] ss:$2 sm:$0xff]
    %v312 = vadd.f32 %v281, %v297
    %v313 = vadd.f32 %v283, %v299
    %v314 = vadd.f32 %v285, %v301
    %v315 = vadd.f32 %v287, %v303
    %v316 = vadd.f32 %v289, %v305
    %v317 = vadd.f32 %v291, %v307
    %v318 = vadd.f32 %v293, %v309
    %v319 = vadd.f32 %v295, %v311
    %v320 = vmul.f32 %v312, 0.5
    %v321 = vmul.f32 %v313, 0.5
    %v322 = vmul.f32 %v314, 0.5
    %v323 = vmul.f32 %v315, 0.5
    %v324 = vmul.f32 %v316, 0.5
    %v325 = vmul.f32 %v317, 0.5
    %v326 = vmul.f32 %v318, 0.5
    %v327 = vmul.f32 %v319, 0.5
    %328 = vst.msk [vmem:[#allocation3] sm:$0xff] %vm264, 0.0
    %329 = vst.msk [vmem:[#allocation3 + $0x8] sm:$0xff] %vm264, 0.0
    %330 = vst.msk [vmem:[#allocation3 + $0x10] sm:$0xff] %vm264, 0.0
    %331 = vst.msk [vmem:[#allocation3 + $0x18] sm:$0xff] %vm264, 0.0
    %332 = vst.msk [vmem:[#allocation3 + $0x20] sm:$0xff] %vm264, 0.0
    %333 = vst.msk [vmem:[#allocation3 + $0x28] sm:$0xff] %vm264, 0.0
    %334 = vst.msk [vmem:[#allocation3 + $0x30] sm:$0xff] %vm264, 0.0
    %335 = vst.msk [vmem:[#allocation3 + $0x38] sm:$0xff] %vm264, 0.0
    %336 = vst.msk [vmem:[#allocation3 + $0x40] sm:$0xff] %vm264, 0.0
    %337 = vst.msk [vmem:[#allocation3 + $0x1] sm:$0xff] %vm264, %v320
    %338 = vst.msk [vmem:[#allocation3 + $0x9] sm:$0xff] %vm264, %v321
    %339 = vst.msk [vmem:[#allocation3 + $0x11] sm:$0xff] %vm264, %v322
    %340 = vst.msk [vmem:[#allocation3 + $0x19] sm:$0xff] %vm264, %v323
    %341 = vst.msk [vmem:[#allocation3 + $0x21] sm:$0xff] %vm264, %v324
    %342 = vst.msk [vmem:[#allocation3 + $0x29] sm:$0xff] %vm264, %v325
    %343 = vst.msk [vmem:[#allocation3 + $0x31] sm:$0xff] %vm264, %v326
    %344 = vst.msk [vmem:[#allocation3 + $0x39] sm:$0xff] %vm264, %v327
    %v345 = vlaneseq
    %v346 = vshrl.u32 %v345, 7
    %v347 = vadd.s32 %v346, 8
    %v348 = vadd.s32 %v346, 16
    %v349 = vadd.s32 %v346, 24
    %v350 = vadd.s32 %v346, 32
    %v351 = vadd.s32 %v346, 40
    %v352 = vadd.s32 %v346, 48
    %v353 = vadd.s32 %v346, 56
    %vm354 = vcmp.lt.s32.totalorder %v346, 0
    %v355 = vsub.s32 0, %v346
    %v356 = vsel %vm354, %v355, %v346
    %v357 = vshrl.u32 %v356, 3
    %v358 = vand.u32 %v356, 7
    %v359 = vsub.s32 0, %v358
    %v360 = vsel %vm354, %v359, %v358
    %vm361 = vcmp.lt.s32.totalorder %v347, 0
    %v362 = vsub.s32 0, %v347
    %v363 = vsel %vm361, %v362, %v347
    %v364 = vshrl.u32 %v363, 3
    %v365 = vand.u32 %v363, 7
    %v366 = vsub.s32 0, %v365
    %v367 = vsel %vm361, %v366, %v365
    %vm368 = vcmp.lt.s32.totalorder %v348, 0
    %v369 = vsub.s32 0, %v348
    %v370 = vsel %vm368, %v369, %v348
    %v371 = vshrl.u32 %v370, 3
    %v372 = vand.u32 %v370, 7
    %v373 = vsub.s32 0, %v372
    %v374 = vsel %vm368, %v373, %v372
    %vm375 = vcmp.lt.s32.totalorder %v349, 0
    %v376 = vsub.s32 0, %v349
    %v377 = vsel %vm375, %v376, %v349
    %v378 = vshrl.u32 %v377, 3
    %v379 = vand.u32 %v377, 7
    %v380 = vsub.s32 0, %v379
    %v381 = vsel %vm375, %v380, %v379
    %vm382 = vcmp.lt.s32.totalorder %v350, 0
    %v383 = vsub.s32 0, %v350
    %v384 = vsel %vm382, %v383, %v350
    %v385 = vshrl.u32 %v384, 3
    %v386 = vand.u32 %v384, 7
    %v387 = vsub.s32 0, %v386
    %v388 = vsel %vm382, %v387, %v386
    %vm389 = vcmp.lt.s32.totalorder %v351, 0
    %v390 = vsub.s32 0, %v351
    %v391 = vsel %vm389, %v390, %v351
    %v392 = vshrl.u32 %v391, 3
    %v393 = vand.u32 %v391, 7
    %v394 = vsub.s32 0, %v393
    %v395 = vsel %vm389, %v394, %v393
    %vm396 = vcmp.lt.s32.totalorder %v352, 0
    %v397 = vsub.s32 0, %v352
    %v398 = vsel %vm396, %v397, %v352
    %v399 = vshrl.u32 %v398, 3
    %v400 = vand.u32 %v398, 7
    %v401 = vsub.s32 0, %v400
    %v402 = vsel %vm396, %v401, %v400
    %vm403 = vcmp.lt.s32.totalorder %v353, 0
    %v404 = vsub.s32 0, %v353
    %v405 = vsel %vm403, %v404, %v353
    %v406 = vshrl.u32 %v405, 3
    %v407 = vand.u32 %v405, 7
    %v408 = vsub.s32 0, %v407
    %v409 = vsel %vm403, %v408, %v407
    %vm410 = vcmp.ne.s32.totalorder %v360, 0
    %vm411 = vcmp.ne.s32.totalorder %v367, 0
    %vm412 = vcmp.ne.s32.totalorder %v374, 0
    %vm413 = vcmp.ne.s32.totalorder %v381, 0
    %vm414 = vcmp.ne.s32.totalorder %v388, 0
    %vm415 = vcmp.ne.s32.totalorder %v395, 0
    %vm416 = vcmp.ne.s32.totalorder %v402, 0
    %vm417 = vcmp.ne.s32.totalorder %v409, 0
    %vm418 = vcmp.lt.s32.totalorder %v360, 0
    %vm419 = vcmp.lt.s32.totalorder %v367, 0
    %vm420 = vcmp.lt.s32.totalorder %v374, 0
    %vm421 = vcmp.lt.s32.totalorder %v381, 0
    %vm422 = vcmp.lt.s32.totalorder %v388, 0
    %vm423 = vcmp.lt.s32.totalorder %v395, 0
    %vm424 = vcmp.lt.s32.totalorder %v402, 0
    %vm425 = vcmp.lt.s32.totalorder %v409, 0
    %vm426 = vmand %vm418, %vm410
    %vm427 = vmand %vm419, %vm411
    %vm428 = vmand %vm420, %vm412
    %vm429 = vmand %vm421, %vm413
    %vm430 = vmand %vm422, %vm414
    %vm431 = vmand %vm423, %vm415
    %vm432 = vmand %vm424, %vm416
    %vm433 = vmand %vm425, %vm417
    %v434 = vadd.s32 %v360, 8
    %v435 = vadd.s32 %v367, 8
    %v436 = vadd.s32 %v374, 8
    %v437 = vadd.s32 %v381, 8
    %v438 = vadd.s32 %v388, 8
    %v439 = vadd.s32 %v395, 8
    %v440 = vadd.s32 %v402, 8
    %v441 = vadd.s32 %v409, 8
    %v442 = vsel %vm426, %v434, %v360
    %v443 = vsel %vm427, %v435, %v367
    %v444 = vsel %vm428, %v436, %v374
    %v445 = vsel %vm429, %v437, %v381
    %v446 = vsel %vm430, %v438, %v388
    %v447 = vsel %vm431, %v439, %v395
    %v448 = vsel %vm432, %v440, %v402
    %v449 = vsel %vm433, %v441, %v409
    %vm450 = vcmp.ne.s32.totalorder %v442, 0
    %vm451 = vcmp.ne.s32.totalorder %v443, 0
    %vm452 = vcmp.ne.s32.totalorder %v444, 0
    %vm453 = vcmp.ne.s32.totalorder %v445, 0
    %vm454 = vcmp.ne.s32.totalorder %v446, 0
    %vm455 = vcmp.ne.s32.totalorder %v447, 0
    %vm456 = vcmp.ne.s32.totalorder %v448, 0
    %vm457 = vcmp.ne.s32.totalorder %v449, 0
    %v458 = vld [vmem:[#allocation3] sm:$0xff]
    %v459 = vld [vmem:[#allocation3 + $0x8] sm:$0xff]
    %v460 = vld [vmem:[#allocation3 + $0x10] sm:$0xff]
    %v461 = vld [vmem:[#allocation3 + $0x18] sm:$0xff]
    %v462 = vld [vmem:[#allocation3 + $0x20] sm:$0xff]
    %v463 = vld [vmem:[#allocation3 + $0x28] sm:$0xff]
    %v464 = vld [vmem:[#allocation3 + $0x30] sm:$0xff]
    %v465 = vld [vmem:[#allocation3 + $0x38] sm:$0xff]
    %v466 = vsel %vm450, 1, 0
    %v467 = vsel %vm451, 1, 0
    %v468 = vsel %vm452, 1, 0
    %v469 = vsel %vm453, 1, 0
    %v470 = vsel %vm454, 1, 0
    %v471 = vsel %vm455, 1, 0
    %v472 = vsel %vm456, 1, 0
    %v473 = vsel %vm457, 1, 0
    %vm474 = vcmp.eq.s32.totalorder %v466, 1
    %vm475 = vcmp.eq.s32.totalorder %v467, 1
    %vm476 = vcmp.eq.s32.totalorder %v468, 1
    %vm477 = vcmp.eq.s32.totalorder %v469, 1
    %vm478 = vcmp.eq.s32.totalorder %v470, 1
    %vm479 = vcmp.eq.s32.totalorder %v471, 1
    %vm480 = vcmp.eq.s32.totalorder %v472, 1
    %vm481 = vcmp.eq.s32.totalorder %v473, 1
    %v482 = vsel %vm474, %v458, 0.0
    %v483 = vsel %vm475, %v459, 0.0
    %v484 = vsel %vm476, %v460, 0.0
    %v485 = vsel %vm477, %v461, 0.0
    %v486 = vsel %vm478, %v462, 0.0
    %v487 = vsel %vm479, %v463, 0.0
    %v488 = vsel %vm480, %v464, 0.0
    %v489 = vsel %vm481, %v465, 0.0
    %v490 = vld [vmem:[#allocation3 + $0x1] sm:$0xff]
    %v491 = vld [vmem:[#allocation3 + $0x9] sm:$0xff]
    %v492 = vld [vmem:[#allocation3 + $0x11] sm:$0xff]
    %v493 = vld [vmem:[#allocation3 + $0x19] sm:$0xff]
    %v494 = vld [vmem:[#allocation3 + $0x21] sm:$0xff]
    %v495 = vld [vmem:[#allocation3 + $0x29] sm:$0xff]
    %v496 = vld [vmem:[#allocation3 + $0x31] sm:$0xff]
    %v497 = vld [vmem:[#allocation3 + $0x39] sm:$0xff]
    %vm498 = vcmp.ne.s32.totalorder %v442, 7
    %vm499 = vcmp.ne.s32.totalorder %v443, 7
    %vm500 = vcmp.ne.s32.totalorder %v444, 7
    %vm501 = vcmp.ne.s32.totalorder %v445, 7
    %vm502 = vcmp.ne.s32.totalorder %v446, 7
    %vm503 = vcmp.ne.s32.totalorder %v447, 7
    %vm504 = vcmp.ne.s32.totalorder %v448, 7
    %vm505 = vcmp.ne.s32.totalorder %v449, 7
    %v506 = vld [vmem:[#allocation3 + $0x2] sm:$0xff]
    %v507 = vld [vmem:[#allocation3 + $0xa] sm:$0xff]
    %v508 = vld [vmem:[#allocation3 + $0x12] sm:$0xff]
    %v509 = vld [vmem:[#allocation3 + $0x1a] sm:$0xff]
    %v510 = vld [vmem:[#allocation3 + $0x22] sm:$0xff]
    %v511 = vld [vmem:[#allocation3 + $0x2a] sm:$0xff]
    %v512 = vld [vmem:[#allocation3 + $0x32] sm:$0xff]
    %v513 = vld [vmem:[#allocation3 + $0x3a] sm:$0xff]
    %v514 = vsel %vm498, 1, 0
    %v515 = vsel %vm499, 1, 0
    %v516 = vsel %vm500, 1, 0
    %v517 = vsel %vm501, 1, 0
    %v518 = vsel %vm502, 1, 0
    %v519 = vsel %vm503, 1, 0
    %v520 = vsel %vm504, 1, 0
    %v521 = vsel %vm505, 1, 0
    %vm522 = vcmp.eq.s32.totalorder %v514, 1
    %vm523 = vcmp.eq.s32.totalorder %v515, 1
    %vm524 = vcmp.eq.s32.totalorder %v516, 1
    %vm525 = vcmp.eq.s32.totalorder %v517, 1
    %vm526 = vcmp.eq.s32.totalorder %v518, 1
    %vm527 = vcmp.eq.s32.totalorder %v519, 1
    %vm528 = vcmp.eq.s32.totalorder %v520, 1
    %vm529 = vcmp.eq.s32.totalorder %v521, 1
    %v530 = vsel %vm522, %v506, 0.0
    %v531 = vsel %vm523, %v507, 0.0
    %v532 = vsel %vm524, %v508, 0.0
    %v533 = vsel %vm525, %v509, 0.0
    %v534 = vsel %vm526, %v510, 0.0
    %v535 = vsel %vm527, %v511, 0.0
    %v536 = vsel %vm528, %v512, 0.0
    %v537 = vsel %vm529, %v513, 0.0
    %v538 = vld [vmem:[%s2] sm:$0xff]
    %v539 = vld [vmem:[%s2 + $0x8] sm:$0xff]
    %v540 = vld [vmem:[%s2 + $0x10] sm:$0xff]
    %v541 = vld [vmem:[%s2 + $0x18] sm:$0xff]
    %s542 = scalar_lea.vmem %s2, 32
    %v543 = vld [vmem:[%s542] sm:$0xff]
    %v544 = vld [vmem:[%s542 + $0x8] sm:$0xff]
    %v545 = vld [vmem:[%s542 + $0x10] sm:$0xff]
    %v546 = vld [vmem:[%s542 + $0x18] sm:$0xff]
    %v548 = vsel %vm264, %v490, 0
    %v551 = vsel %vm264, %v491, 0
    %v554 = vsel %vm264, %v492, 0
    %v557 = vsel %vm264, %v493, 0
    %v560 = vsel %vm264, %v494, 0
    %v563 = vsel %vm264, %v495, 0
    %v566 = vsel %vm264, %v496, 0
    %v569 = vsel %vm264, %v497, 0
    %571 = vmatprep.subr.mxu0 0.0
    %572 = vmatpush1.msra.mxu0 0.0
    %573 = vmatprep.subr.mxu0 0.0
    %574 = vmatpush1.msra.mxu0 0.0
    %575 = vmatprep.subr.mxu0 0.0
    %576 = vmatpush1.msra.mxu0 0.0
    %577 = vmatprep.subr.mxu0 0.0
    %578 = vmatpush1.msra.mxu0 0.0
    %579 = vmatprep.subr.mxu0 0.0
    %580 = vmatpush1.msra.mxu0 0.0
    %581 = vmatprep.subr.mxu0 0.0
    %582 = vmatpush1.msra.mxu0 0.0
    %583 = vmatprep.subr.mxu0 0.0
    %584 = vmatpush1.msra.mxu0 0.0
    %585 = vmatprep.subr.mxu0 0.0
    %586 = vmatpush1.msra.mxu0 0.0
    %587 = vmatprep.subr.mxu0 0.0
    %588 = vmatpush1.msra.mxu0 0.0
    %589 = vmatprep.subr.mxu0 0.0
    %590 = vmatpush1.msra.mxu0 0.0
    %591 = vmatprep.subr.mxu0 0.0
    %592 = vmatpush1.msra.mxu0 0.0
    %593 = vmatprep.subr.mxu0 0.0
    %594 = vmatpush1.msra.mxu0 0.0
    %595 = vmatprep.subr.mxu0 0.0
    %596 = vmatpush1.msra.mxu0 %v546
    %597 = vmatprep.subr.mxu0 0.0
    %598 = vmatpush1.msra.mxu0 %v545
    %599 = vmatprep.subr.mxu0 0.0
    %600 = vmatpush1.msra.mxu0 %v544
    %601 = vmatprep.subr.mxu0 0.0
    %602 = vmatpush1.msra.mxu0 %v543
    %603 = vmatprep.subr.mxu0 0.0
    %604 = vmatpush2.msra.mxu0 0.0
    %605 = vmatprep.subr.mxu0 0.0
    %606 = vmatpush2.msra.mxu0 0.0
    %607 = vmatprep.subr.mxu0 0.0
    %608 = vmatpush2.msra.mxu0 0.0
    %609 = vmatprep.subr.mxu0 0.0
    %610 = vmatpush2.msra.mxu0 0.0
    %611 = vmatprep.subr.mxu0 0.0
    %612 = vmatpush2.msra.mxu0 0.0
    %613 = vmatprep.subr.mxu0 0.0
    %614 = vmatpush2.msra.mxu0 0.0
    %615 = vmatprep.subr.mxu0 0.0
    %616 = vmatpush2.msra.mxu0 0.0
    %617 = vmatprep.subr.mxu0 0.0
    %618 = vmatpush2.msra.mxu0 0.0
    %619 = vmatprep.subr.mxu0 0.0
    %620 = vmatpush2.msra.mxu0 0.0
    %621 = vmatprep.subr.mxu0 0.0
    %622 = vmatpush2.msra.mxu0 0.0
    %623 = vmatprep.subr.mxu0 0.0
    %624 = vmatpush2.msra.mxu0 0.0
    %625 = vmatprep.subr.mxu0 0.0
    %626 = vmatpush2.msra.mxu0 0.0
    %627 = vmatprep.subr.mxu0 0.0
    %628 = vmatpush2.msra.mxu0 0.0
    %629 = vmatprep.subr.mxu0 0.0
    %630 = vmatpush2.msra.mxu0 0.0
    %631 = vmatprep.subr.mxu0 0.0
    %632 = vmatpush2.msra.mxu0 0.0
    %633 = vmatprep.subr.mxu0 0.0
    %634 = vmatpush2.msra.mxu0 0.0
    %635 = vmatprep.mubr.f32.mxu0 0.0
    %636 = vmatmul.mubr.f32.gmra.mxu0 %v548
    %v637 = vpop.f32.mrf.mxu0
    %v638 = vadd.f32 0.0, %v637
    %v639 = vpop.f32.mrf.mxu0
    %640 = vmatprep.mubr.f32.mxu0 0.0
    %641 = vmatmul.mubr.f32.gmra.mxu0 %v551
    %v642 = vpop.f32.mrf.mxu0
    %v643 = vadd.f32 0.0, %v642
    %v644 = vpop.f32.mrf.mxu0
    %645 = vmatprep.mubr.f32.mxu0 0.0
    %646 = vmatmul.mubr.f32.gmra.mxu0 %v554
    %v647 = vpop.f32.mrf.mxu0
    %v648 = vadd.f32 0.0, %v647
    %v649 = vpop.f32.mrf.mxu0
    %650 = vmatprep.mubr.f32.mxu0 0.0
    %651 = vmatmul.mubr.f32.gmra.mxu0 %v557
    %v652 = vpop.f32.mrf.mxu0
    %v653 = vadd.f32 0.0, %v652
    %v654 = vpop.f32.mrf.mxu0
    %655 = vmatprep.mubr.f32.mxu0 0.0
    %656 = vmatmul.mubr.f32.gmra.mxu0 %v560
    %v657 = vpop.f32.mrf.mxu0
    %v658 = vadd.f32 0.0, %v657
    %v659 = vpop.f32.mrf.mxu0
    %660 = vmatprep.mubr.f32.mxu0 0.0
    %661 = vmatmul.mubr.f32.gmra.mxu0 %v563
    %v662 = vpop.f32.mrf.mxu0
    %v663 = vadd.f32 0.0, %v662
    %v664 = vpop.f32.mrf.mxu0
    %665 = vmatprep.mubr.f32.mxu0 0.0
    %666 = vmatmul.mubr.f32.gmra.mxu0 %v566
    %v667 = vpop.f32.mrf.mxu0
    %v668 = vadd.f32 0.0, %v667
    %v669 = vpop.f32.mrf.mxu0
    %670 = vmatprep.mubr.f32.mxu0 0.0
    %671 = vmatmul.mubr.f32.gmra.mxu0 %v569
    %v672 = vpop.f32.mrf.mxu0
    %v673 = vadd.f32 0.0, %v672
    %v674 = vpop.f32.mrf.mxu0
    %675 = vdwg.mxu0
    %v677 = vsel %vm264, %v482, 0
    %v680 = vsel %vm264, %v483, 0
    %v683 = vsel %vm264, %v484, 0
    %v686 = vsel %vm264, %v485, 0
    %v689 = vsel %vm264, %v486, 0
    %v692 = vsel %vm264, %v487, 0
    %v695 = vsel %vm264, %v488, 0
    %v698 = vsel %vm264, %v489, 0
    %700 = vmatprep.subr.mxu0 0.0
    %701 = vmatpush1.msra.mxu0 0.0
    %702 = vmatprep.subr.mxu0 0.0
    %703 = vmatpush1.msra.mxu0 0.0
    %704 = vmatprep.subr.mxu0 0.0
    %705 = vmatpush1.msra.mxu0 0.0
    %706 = vmatprep.subr.mxu0 0.0
    %707 = vmatpush1.msra.mxu0 0.0
    %708 = vmatprep.subr.mxu0 0.0
    %709 = vmatpush1.msra.mxu0 0.0
    %710 = vmatprep.subr.mxu0 0.0
    %711 = vmatpush1.msra.mxu0 0.0
    %712 = vmatprep.subr.mxu0 0.0
    %713 = vmatpush1.msra.mxu0 0.0
    %714 = vmatprep.subr.mxu0 0.0
    %715 = vmatpush1.msra.mxu0 0.0
    %716 = vmatprep.subr.mxu0 0.0
    %717 = vmatpush1.msra.mxu0 0.0
    %718 = vmatprep.subr.mxu0 0.0
    %719 = vmatpush1.msra.mxu0 0.0
    %720 = vmatprep.subr.mxu0 0.0
    %721 = vmatpush1.msra.mxu0 0.0
    %722 = vmatprep.subr.mxu0 0.0
    %723 = vmatpush1.msra.mxu0 0.0
    %724 = vmatprep.subr.mxu0 0.0
    %725 = vmatpush1.msra.mxu0 %v541
    %726 = vmatprep.subr.mxu0 0.0
    %727 = vmatpush1.msra.mxu0 %v540
    %728 = vmatprep.subr.mxu0 0.0
    %729 = vmatpush1.msra.mxu0 %v539
    %730 = vmatprep.subr.mxu0 0.0
    %731 = vmatpush1.msra.mxu0 %v538
    %732 = vmatprep.subr.mxu0 0.0
    %733 = vmatpush2.msra.mxu0 0.0
    %734 = vmatprep.subr.mxu0 0.0
    %735 = vmatpush2.msra.mxu0 0.0
    %736 = vmatprep.subr.mxu0 0.0
    %737 = vmatpush2.msra.mxu0 0.0
    %738 = vmatprep.subr.mxu0 0.0
    %739 = vmatpush2.msra.mxu0 0.0
    %740 = vmatprep.subr.mxu0 0.0
    %741 = vmatpush2.msra.mxu0 0.0
    %742 = vmatprep.subr.mxu0 0.0
    %743 = vmatpush2.msra.mxu0 0.0
    %744 = vmatprep.subr.mxu0 0.0
    %745 = vmatpush2.msra.mxu0 0.0
    %746 = vmatprep.subr.mxu0 0.0
    %747 = vmatpush2.msra.mxu0 0.0
    %748 = vmatprep.subr.mxu0 0.0
    %749 = vmatpush2.msra.mxu0 0.0
    %750 = vmatprep.subr.mxu0 0.0
    %751 = vmatpush2.msra.mxu0 0.0
    %752 = vmatprep.subr.mxu0 0.0
    %753 = vmatpush2.msra.mxu0 0.0
    %754 = vmatprep.subr.mxu0 0.0
    %755 = vmatpush2.msra.mxu0 0.0
    %756 = vmatprep.subr.mxu0 0.0
    %757 = vmatpush2.msra.mxu0 0.0
    %758 = vmatprep.subr.mxu0 0.0
    %759 = vmatpush2.msra.mxu0 0.0
    %760 = vmatprep.subr.mxu0 0.0
    %761 = vmatpush2.msra.mxu0 0.0
    %762 = vmatprep.subr.mxu0 0.0
    %763 = vmatpush2.msra.mxu0 0.0
    %764 = vmatprep.mubr.f32.mxu0 0.0
    %765 = vmatmul.mubr.f32.gmra.mxu0 %v677
    %v766 = vpop.f32.mrf.mxu0
    %v767 = vadd.f32 %v638, %v766
    %v768 = vpop.f32.mrf.mxu0
    %769 = vmatprep.mubr.f32.mxu0 0.0
    %770 = vmatmul.mubr.f32.gmra.mxu0 %v680
    %v771 = vpop.f32.mrf.mxu0
    %v772 = vadd.f32 %v643, %v771
    %v773 = vpop.f32.mrf.mxu0
    %774 = vmatprep.mubr.f32.mxu0 0.0
    %775 = vmatmul.mubr.f32.gmra.mxu0 %v683
    %v776 = vpop.f32.mrf.mxu0
    %v777 = vadd.f32 %v648, %v776
    %v778 = vpop.f32.mrf.mxu0
    %779 = vmatprep.mubr.f32.mxu0 0.0
    %780 = vmatmul.mubr.f32.gmra.mxu0 %v686
    %v781 = vpop.f32.mrf.mxu0
    %v782 = vadd.f32 %v653, %v781
    %v783 = vpop.f32.mrf.mxu0
    %784 = vmatprep.mubr.f32.mxu0 0.0
    %785 = vmatmul.mubr.f32.gmra.mxu0 %v689
    %v786 = vpop.f32.mrf.mxu0
    %v787 = vadd.f32 %v658, %v786
    %v788 = vpop.f32.mrf.mxu0
    %789 = vmatprep.mubr.f32.mxu0 0.0
    %790 = vmatmul.mubr.f32.gmra.mxu0 %v692
    %v791 = vpop.f32.mrf.mxu0
    %v792 = vadd.f32 %v663, %v791
    %v793 = vpop.f32.mrf.mxu0
    %794 = vmatprep.mubr.f32.mxu0 0.0
    %795 = vmatmul.mubr.f32.gmra.mxu0 %v695
    %v796 = vpop.f32.mrf.mxu0
    %v797 = vadd.f32 %v668, %v796
    %v798 = vpop.f32.mrf.mxu0
    %799 = vmatprep.mubr.f32.mxu0 0.0
    %800 = vmatmul.mubr.f32.gmra.mxu0 %v698
    %v801 = vpop.f32.mrf.mxu0
    %v802 = vadd.f32 %v673, %v801
    %v803 = vpop.f32.mrf.mxu0
    %804 = vdwg.mxu0
    %s805 = scalar_lea.vmem %s2, 64
    %v806 = vld [vmem:[%s805] sm:$0xff]
    %v807 = vld [vmem:[%s805 + $0x8] sm:$0xff]
    %v808 = vld [vmem:[%s805 + $0x10] sm:$0xff]
    %v809 = vld [vmem:[%s805 + $0x18] sm:$0xff]
    %v811 = vsel %vm264, %v530, 0
    %v814 = vsel %vm264, %v531, 0
    %v817 = vsel %vm264, %v532, 0
    %v820 = vsel %vm264, %v533, 0
    %v823 = vsel %vm264, %v534, 0
    %v826 = vsel %vm264, %v535, 0
    %v829 = vsel %vm264, %v536, 0
    %v832 = vsel %vm264, %v537, 0
    %834 = vmatprep.subr.mxu0 0.0
    %835 = vmatpush1.msra.mxu0 0.0
    %836 = vmatprep.subr.mxu0 0.0
    %837 = vmatpush1.msra.mxu0 0.0
    %838 = vmatprep.subr.mxu0 0.0
    %839 = vmatpush1.msra.mxu0 0.0
    %840 = vmatprep.subr.mxu0 0.0
    %841 = vmatpush1.msra.mxu0 0.0
    %842 = vmatprep.subr.mxu0 0.0
    %843 = vmatpush1.msra.mxu0 0.0
    %844 = vmatprep.subr.mxu0 0.0
    %845 = vmatpush1.msra.mxu0 0.0
    %846 = vmatprep.subr.mxu0 0.0
    %847 = vmatpush1.msra.mxu0 0.0
    %848 = vmatprep.subr.mxu0 0.0
    %849 = vmatpush1.msra.mxu0 0.0
    %850 = vmatprep.subr.mxu0 0.0
    %851 = vmatpush1.msra.mxu0 0.0
    %852 = vmatprep.subr.mxu0 0.0
    %853 = vmatpush1.msra.mxu0 0.0
    %854 = vmatprep.subr.mxu0 0.0
    %855 = vmatpush1.msra.mxu0 0.0
    %856 = vmatprep.subr.mxu0 0.0
    %857 = vmatpush1.msra.mxu0 0.0
    %858 = vmatprep.subr.mxu0 0.0
    %859 = vmatpush1.msra.mxu0 %v809
    %860 = vmatprep.subr.mxu0 0.0
    %861 = vmatpush1.msra.mxu0 %v808
    %862 = vmatprep.subr.mxu0 0.0
    %863 = vmatpush1.msra.mxu0 %v807
    %864 = vmatprep.subr.mxu0 0.0
    %865 = vmatpush1.msra.mxu0 %v806
    %866 = vmatprep.subr.mxu0 0.0
    %867 = vmatpush2.msra.mxu0 0.0
    %868 = vmatprep.subr.mxu0 0.0
    %869 = vmatpush2.msra.mxu0 0.0
    %870 = vmatprep.subr.mxu0 0.0
    %871 = vmatpush2.msra.mxu0 0.0
    %872 = vmatprep.subr.mxu0 0.0
    %873 = vmatpush2.msra.mxu0 0.0
    %874 = vmatprep.subr.mxu0 0.0
    %875 = vmatpush2.msra.mxu0 0.0
    %876 = vmatprep.subr.mxu0 0.0
    %877 = vmatpush2.msra.mxu0 0.0
    %878 = vmatprep.subr.mxu0 0.0
    %879 = vmatpush2.msra.mxu0 0.0
    %880 = vmatprep.subr.mxu0 0.0
    %881 = vmatpush2.msra.mxu0 0.0
    %882 = vmatprep.subr.mxu0 0.0
    %883 = vmatpush2.msra.mxu0 0.0
    %884 = vmatprep.subr.mxu0 0.0
    %885 = vmatpush2.msra.mxu0 0.0
    %886 = vmatprep.subr.mxu0 0.0
    %887 = vmatpush2.msra.mxu0 0.0
    %888 = vmatprep.subr.mxu0 0.0
    %889 = vmatpush2.msra.mxu0 0.0
    %890 = vmatprep.subr.mxu0 0.0
    %891 = vmatpush2.msra.mxu0 0.0
    %892 = vmatprep.subr.mxu0 0.0
    %893 = vmatpush2.msra.mxu0 0.0
    %894 = vmatprep.subr.mxu0 0.0
    %895 = vmatpush2.msra.mxu0 0.0
    %896 = vmatprep.subr.mxu0 0.0
    %897 = vmatpush2.msra.mxu0 0.0
    %898 = vmatprep.mubr.f32.mxu0 0.0
    %899 = vmatmul.mubr.f32.gmra.mxu0 %v811
    %v900 = vpop.f32.mrf.mxu0
    %v901 = vadd.f32 0.0, %v900
    %v902 = vpop.f32.mrf.mxu0
    %903 = vmatprep.mubr.f32.mxu0 0.0
    %904 = vmatmul.mubr.f32.gmra.mxu0 %v814
    %v905 = vpop.f32.mrf.mxu0
    %v906 = vadd.f32 0.0, %v905
    %v907 = vpop.f32.mrf.mxu0
    %908 = vmatprep.mubr.f32.mxu0 0.0
    %909 = vmatmul.mubr.f32.gmra.mxu0 %v817
    %v910 = vpop.f32.mrf.mxu0
    %v911 = vadd.f32 0.0, %v910
    %v912 = vpop.f32.mrf.mxu0
    %913 = vmatprep.mubr.f32.mxu0 0.0
    %914 = vmatmul.mubr.f32.gmra.mxu0 %v820
    %v915 = vpop.f32.mrf.mxu0
    %v916 = vadd.f32 0.0, %v915
    %v917 = vpop.f32.mrf.mxu0
    %918 = vmatprep.mubr.f32.mxu0 0.0
    %919 = vmatmul.mubr.f32.gmra.mxu0 %v823
    %v920 = vpop.f32.mrf.mxu0
    %v921 = vadd.f32 0.0, %v920
    %v922 = vpop.f32.mrf.mxu0
    %923 = vmatprep.mubr.f32.mxu0 0.0
    %924 = vmatmul.mubr.f32.gmra.mxu0 %v826
    %v925 = vpop.f32.mrf.mxu0
    %v926 = vadd.f32 0.0, %v925
    %v927 = vpop.f32.mrf.mxu0
    %928 = vmatprep.mubr.f32.mxu0 0.0
    %929 = vmatmul.mubr.f32.gmra.mxu0 %v829
    %v930 = vpop.f32.mrf.mxu0
    %v931 = vadd.f32 0.0, %v930
    %v932 = vpop.f32.mrf.mxu0
    %933 = vmatprep.mubr.f32.mxu0 0.0
    %934 = vmatmul.mubr.f32.gmra.mxu0 %v832
    %v935 = vpop.f32.mrf.mxu0
    %v936 = vadd.f32 0.0, %v935
    %v937 = vpop.f32.mrf.mxu0
    %938 = vdwg.mxu0
    %v939 = vadd.f32 %v767, %v901
    %v940 = vadd.f32 %v772, %v906
    %v941 = vadd.f32 %v777, %v911
    %v942 = vadd.f32 %v782, %v916
    %v943 = vadd.f32 %v787, %v921
    %v944 = vadd.f32 %v792, %v926
    %v945 = vadd.f32 %v797, %v931
    %v946 = vadd.f32 %v802, %v936
    %v947 = vlaneseq
    %v948 = vshrl.u32 %v947, 7
    %v949 = vsub.s32 0, %v948
    %v950 = vrot.slane %v25, %v949
    %v951 = vadd.f32 %v939, %v950
    %v952 = vadd.f32 %v940, %v950
    %v953 = vadd.f32 %v941, %v950
    %v954 = vadd.f32 %v942, %v950
    %v955 = vadd.f32 %v943, %v950
    %v956 = vadd.f32 %v944, %v950
    %v957 = vadd.f32 %v945, %v950
    %v958 = vadd.f32 %v946, %v950
    %v959 = vmax.f32 %v951, 0.0
    %v960 = vmax.f32 %v952, 0.0
    %v961 = vmax.f32 %v953, 0.0
    %v962 = vmax.f32 %v954, 0.0
    %v963 = vmax.f32 %v955, 0.0
    %v964 = vmax.f32 %v956, 0.0
    %v965 = vmax.f32 %v957, 0.0
    %v966 = vmax.f32 %v958, 0.0
    %vm967 = vcmask 523264
    %968 = vst.msk [vmem:[#allocation4] sm:$0xff] %vm967, %v959
    %969 = vst.msk [vmem:[#allocation4 + $0x8] sm:$0xff] %vm967, %v960
    %970 = vst.msk [vmem:[#allocation4 + $0x10] sm:$0xff] %vm967, %v961
    %971 = vst.msk [vmem:[#allocation4 + $0x18] sm:$0xff] %vm967, %v962
    %972 = vst.msk [vmem:[#allocation4 + $0x20] sm:$0xff] %vm967, %v963
    %973 = vst.msk [vmem:[#allocation4 + $0x28] sm:$0xff] %vm967, %v964
    %974 = vst.msk [vmem:[#allocation4 + $0x30] sm:$0xff] %vm967, %v965
    %975 = vst.msk [vmem:[#allocation4 + $0x38] sm:$0xff] %vm967, %v966
    %v976 = vld [vmem:[#allocation4] ss:$8 sm:$0xf]
    %v977 = vld [vmem:[#allocation4] ss:$8 sm:$0xf0]
    %v978 = vor.u32 %v976, %v977
    %s979 = scalar_lea.vmem [#allocation4], 1
    %v980 = vld [vmem:[%s979] ss:$8 sm:$0xf]
    %v981 = vld [vmem:[%s979] ss:$8 sm:$0xf0]
    %v982 = vor.u32 %v980, %v981
    %v983 = vadd.f32 %v978, %v982
    %s984 = scalar_lea.vmem [#allocation4], 2
    %v985 = vld [vmem:[%s984] ss:$8 sm:$0xf]
    %v986 = vld [vmem:[%s984] ss:$8 sm:$0xf0]
    %v987 = vor.u32 %v985, %v986
    %v988 = vadd.f32 %v983, %v987
    %s989 = scalar_lea.vmem [#allocation4], 3
    %v990 = vld [vmem:[%s989] ss:$8 sm:$0xf]
    %v991 = vld [vmem:[%s989] ss:$8 sm:$0xf0]
    %v992 = vor.u32 %v990, %v991
    %v993 = vadd.f32 %v988, %v992
    %s994 = scalar_lea.vmem [#allocation4], 4
    %v995 = vld [vmem:[%s994] ss:$8 sm:$0xf]
    %v996 = vld [vmem:[%s994] ss:$8 sm:$0xf0]
    %v997 = vor.u32 %v995, %v996
    %v998 = vadd.f32 %v993, %v997
    %s999 = scalar_lea.vmem [#allocation4], 5
    %v1000 = vld [vmem:[%s999] ss:$8 sm:$0xf]
    %v1001 = vld [vmem:[%s999] ss:$8 sm:$0xf0]
    %v1002 = vor.u32 %v1000, %v1001
    %v1003 = vadd.f32 %v998, %v1002
    %s1004 = scalar_lea.vmem [#allocation4], 6
    %v1005 = vld [vmem:[%s1004] ss:$8 sm:$0xf]
    %v1006 = vld [vmem:[%s1004] ss:$8 sm:$0xf0]
    %v1007 = vor.u32 %v1005, %v1006
    %v1008 = vadd.f32 %v1003, %v1007
    %s1009 = scalar_lea.vmem [#allocation4], 7
    %v1010 = vld [vmem:[%s1009] ss:$8 sm:$0xf]
    %v1011 = vld [vmem:[%s1009] ss:$8 sm:$0xf0]
    %v1012 = vor.u32 %v1010, %v1011
    %v1013 = vadd.f32 %v1008, %v1012
    %v1014 = vmul.f32 %v1013, 0.125
    %v1015 = vld [vmem:[%s3] sm:$0xff]
    %v1016 = vld [vmem:[%s3 + $0x8] sm:$0xff]
    %v1017 = vld [vmem:[%s3 + $0x10] sm:$0xff]
    %v1018 = vld [vmem:[%s3 + $0x18] sm:$0xff]
    %v1019 = vld [vmem:[%s3 + $0x20] sm:$0xff]
    %v1020 = vld [vmem:[%s3 + $0x28] sm:$0xff]
    %v1021 = vld [vmem:[%s3 + $0x30] sm:$0xff]
    %v1022 = vld [vmem:[%s3 + $0x38] sm:$0xff]
    %v1023 = vlaneseq
    %v1024 = vshrl.u32 %v1023, 7
    %v1025 = vsub.s32 0, %v1024
    %v1026 = vrot.slane %v26, %v1025
    %v1028 = vsel %vm967, %v1014, 0
    %1030 = vmatprep.subr.mxu0 0.0
    %1031 = vmatpush1.msra.mxu0 0.0
    %1032 = vmatprep.subr.mxu0 0.0
    %1033 = vmatpush1.msra.mxu0 0.0
    %1034 = vmatprep.subr.mxu0 0.0
    %1035 = vmatpush1.msra.mxu0 0.0
    %1036 = vmatprep.subr.mxu0 0.0
    %1037 = vmatpush1.msra.mxu0 0.0
    %1038 = vmatprep.subr.mxu0 0.0
    %1039 = vmatpush1.msra.mxu0 0.0
    %1040 = vmatprep.subr.mxu0 0.0
    %1041 = vmatpush1.msra.mxu0 0.0
    %1042 = vmatprep.subr.mxu0 0.0
    %1043 = vmatpush1.msra.mxu0 0.0
    %1044 = vmatprep.subr.mxu0 0.0
    %1045 = vmatpush1.msra.mxu0 0.0
    %1046 = vmatprep.subr.mxu0 0.0
    %1047 = vmatpush1.msra.mxu0 %v1022
    %1048 = vmatprep.subr.mxu0 0.0
    %1049 = vmatpush1.msra.mxu0 %v1021
    %1050 = vmatprep.subr.mxu0 0.0
    %1051 = vmatpush1.msra.mxu0 %v1020
    %1052 = vmatprep.subr.mxu0 0.0
    %1053 = vmatpush1.msra.mxu0 %v1019
    %1054 = vmatprep.subr.mxu0 0.0
    %1055 = vmatpush1.msra.mxu0 %v1018
    %1056 = vmatprep.subr.mxu0 0.0
    %1057 = vmatpush1.msra.mxu0 %v1017
    %1058 = vmatprep.subr.mxu0 0.0
    %1059 = vmatpush1.msra.mxu0 %v1016
    %1060 = vmatprep.subr.mxu0 0.0
    %1061 = vmatpush1.msra.mxu0 %v1015
    %1062 = vmatprep.subr.mxu0 0.0
    %1063 = vmatpush2.msra.mxu0 0.0
    %1064 = vmatprep.subr.mxu0 0.0
    %1065 = vmatpush2.msra.mxu0 0.0
    %1066 = vmatprep.subr.mxu0 0.0
    %1067 = vmatpush2.msra.mxu0 0.0
    %1068 = vmatprep.subr.mxu0 0.0
    %1069 = vmatpush2.msra.mxu0 0.0
    %1070 = vmatprep.subr.mxu0 0.0
    %1071 = vmatpush2.msra.mxu0 0.0
    %1072 = vmatprep.subr.mxu0 0.0
    %1073 = vmatpush2.msra.mxu0 0.0
    %1074 = vmatprep.subr.mxu0 0.0
    %1075 = vmatpush2.msra.mxu0 0.0
    %1076 = vmatprep.subr.mxu0 0.0
    %1077 = vmatpush2.msra.mxu0 0.0
    %1078 = vmatprep.subr.mxu0 0.0
    %1079 = vmatpush2.msra.mxu0 0.0
    %1080 = vmatprep.subr.mxu0 0.0
    %1081 = vmatpush2.msra.mxu0 0.0
    %1082 = vmatprep.subr.mxu0 0.0
    %1083 = vmatpush2.msra.mxu0 0.0
    %1084 = vmatprep.subr.mxu0 0.0
    %1085 = vmatpush2.msra.mxu0 0.0
    %1086 = vmatprep.subr.mxu0 0.0
    %1087 = vmatpush2.msra.mxu0 0.0
    %1088 = vmatprep.subr.mxu0 0.0
    %1089 = vmatpush2.msra.mxu0 0.0
    %1090 = vmatprep.subr.mxu0 0.0
    %1091 = vmatpush2.msra.mxu0 0.0
    %1092 = vmatprep.subr.mxu0 0.0
    %1093 = vmatpush2.msra.mxu0 0.0
    %1094 = vmatprep.mubr.f32.mxu0 0.0
    %1095 = vmatmul.mubr.f32.gmra.mxu0 %v1028
    %v1096 = vpop.f32.mrf.mxu0
    %v1097 = vadd.f32 %v1026, %v1096
    %v1098 = vpop.f32.mrf.mxu0
    %1099 = vdwg.mxu0
    %v1100 = vmax.f32 %v1097, 0.0
    %v1101 = vld [vmem:[%s4] sm:$0xff]
    %v1102 = vld [vmem:[%s4 + $0x8] sm:$0xff]
    %v1103 = vld [vmem:[%s4 + $0x10] sm:$0xff]
    %v1104 = vld [vmem:[%s4 + $0x18] sm:$0xff]
    %v1105 = vld [vmem:[%s4 + $0x20] sm:$0xff]
    %v1106 = vld [vmem:[%s4 + $0x28] sm:$0xff]
    %v1107 = vld [vmem:[%s4 + $0x30] sm:$0x3]
    %v1108 = vlaneseq
    %v1109 = vshrl.u32 %v1108, 7
    %v1110 = vsub.s32 0, %v1109
    %v1111 = vrot.slane %v27, %v1110
    %vm1112 = vcmask 408576
    %v1114 = vsel %vm1112, %v1100, 0
    %vm1116 = vcmask 1041408
    %v1118 = vsel %vm1116, %v1107, 0
    %1120 = vmatprep.subr.mxu0 0.0
    %1121 = vmatpush1.msra.mxu0 0.0
    %1122 = vmatprep.subr.mxu0 0.0
    %1123 = vmatpush1.msra.mxu0 0.0
    %1124 = vmatprep.subr.mxu0 0.0
    %1125 = vmatpush1.msra.mxu0 0.0
    %1126 = vmatprep.subr.mxu0 0.0
    %1127 = vmatpush1.msra.mxu0 0.0
    %1128 = vmatprep.subr.mxu0 0.0
    %1129 = vmatpush1.msra.mxu0 0.0
    %1130 = vmatprep.subr.mxu0 0.0
    %1131 = vmatpush1.msra.mxu0 0.0
    %1132 = vmatprep.subr.mxu0 0.0
    %1133 = vmatpush1.msra.mxu0 0.0
    %1134 = vmatprep.subr.mxu0 0.0
    %1135 = vmatpush1.msra.mxu0 0.0
    %1136 = vmatprep.subr.mxu0 0.0
    %1137 = vmatpush1.msra.mxu0 0.0
    %1138 = vmatprep.subr.mxu0 0.0
    %1139 = vmatpush1.msra.mxu0 %v1118
    %1140 = vmatprep.subr.mxu0 0.0
    %1141 = vmatpush1.msra.mxu0 %v1106
    %1142 = vmatprep.subr.mxu0 0.0
    %1143 = vmatpush1.msra.mxu0 %v1105
    %1144 = vmatprep.subr.mxu0 0.0
    %1145 = vmatpush1.msra.mxu0 %v1104
    %1146 = vmatprep.subr.mxu0 0.0
    %1147 = vmatpush1.msra.mxu0 %v1103
    %1148 = vmatprep.subr.mxu0 0.0
    %1149 = vmatpush1.msra.mxu0 %v1102
    %1150 = vmatprep.subr.mxu0 0.0
    %1151 = vmatpush1.msra.mxu0 %v1101
    %1152 = vmatprep.subr.mxu0 0.0
    %1153 = vmatpush2.msra.mxu0 0.0
    %1154 = vmatprep.subr.mxu0 0.0
    %1155 = vmatpush2.msra.mxu0 0.0
    %1156 = vmatprep.subr.mxu0 0.0
    %1157 = vmatpush2.msra.mxu0 0.0
    %1158 = vmatprep.subr.mxu0 0.0
    %1159 = vmatpush2.msra.mxu0 0.0
    %1160 = vmatprep.subr.mxu0 0.0
    %1161 = vmatpush2.msra.mxu0 0.0
    %1162 = vmatprep.subr.mxu0 0.0
    %1163 = vmatpush2.msra.mxu0 0.0
    %1164 = vmatprep.subr.mxu0 0.0
    %1165 = vmatpush2.msra.mxu0 0.0
    %1166 = vmatprep.subr.mxu0 0.0
    %1167 = vmatpush2.msra.mxu0 0.0
    %1168 = vmatprep.subr.mxu0 0.0
    %1169 = vmatpush2.msra.mxu0 0.0
    %1170 = vmatprep.subr.mxu0 0.0
    %1171 = vmatpush2.msra.mxu0 0.0
    %1172 = vmatprep.subr.mxu0 0.0
    %1173 = vmatpush2.msra.mxu0 0.0
    %1174 = vmatprep.subr.mxu0 0.0
    %1175 = vmatpush2.msra.mxu0 0.0
    %1176 = vmatprep.subr.mxu0 0.0
    %1177 = vmatpush2.msra.mxu0 0.0
    %1178 = vmatprep.subr.mxu0 0.0
    %1179 = vmatpush2.msra.mxu0 0.0
    %1180 = vmatprep.subr.mxu0 0.0
    %1181 = vmatpush2.msra.mxu0 0.0
    %1182 = vmatprep.subr.mxu0 0.0
    %1183 = vmatpush2.msra.mxu0 0.0
    %1184 = vmatprep.mubr.f32.mxu0 0.0
    %1185 = vmatmul.mubr.f32.gmra.mxu0 %v1114
    %v1186 = vpop.f32.mrf.mxu0
    %v1187 = vadd.f32 %v1111, %v1186
    %v1188 = vpop.f32.mrf.mxu0
    %1189 = vdwg.mxu0
    %vm1190 = vcmask 48128
    %v1191 = vsel %vm1190, %v1187, -inf
    %1192 = vmax.xlane.f32.xlu0 %v1191
    %v1193 = vpop.xlane.xlu0 %1192
    %v1194 = vsub.f32 %v1187, %v1193
    %v1195 = vmul.f32 %v1194, 1.442695
    %v1196 = vpow.pop %v1195
    %v1197 = vsel %vm1190, %v1196, 0.0
    %1198 = vadd.xlane.f32.xlu0 %v1197
    %v1199 = vpop.xlane.xlu0 %1198
    %v1200 = vrcp.pop %v1199
    %v1201 = vmul.f32 %v1196, %v1200
    %1202 = vst.msk [vmem:[#allocation5] sm:$0xff] %vm1190, %v1201
    // Predicated region
    $region26: #{tpu_custom_call.1} parent=1 // pred_check
      _
    $region27: #{tpu_custom_call.1} parent=1 // pred_check_branch
      %1204 = sbr.rel (0) target = $region29
    $region28: #{tpu_custom_call.1} parent=1 // pred_region
      %s1206 = ssub.s32 128, 128
      %1207 = vsyncadd [#allocation6], %s1206
      %s1209 = sshll.u32 [#allocation5], 4
      %s1210 = int_to_ptr.vmem [resolvable:$true] %s1209
      %1212 = dma.vmem_to_hbm [thread:$0]  %s1210, 128, %s6, [#allocation6]
    $region29: #{tpu_custom_call.1} parent=1 // pred_fallthru
      _
    // Predicated region
    $region30: #{tpu_custom_call.1} parent=1 // pred_check
      _
    $region31: #{tpu_custom_call.1} parent=1 // pred_check_branch
      %1214 = sbr.rel (0) target = $region33
    $region32: #{tpu_custom_call.1} parent=1 // pred_region
      %1215 = dma.done [#allocation6], 128
    $region33: #{tpu_custom_call.1} parent=1 // pred_fallthru
      _
    %1216 = vsyncpa [#allocation6], 1

</llo_original>
